<compile_context>
chip_gen: v6e
topology: v6e:2x2x1
jax: 0.10.0
libtpu: 0.0.40
codegen_flags: <defaults>
</compile_context>

<pallas_src>
import functools

import jax
import jax.numpy as jnp
from jax import lax
from jax.experimental import pallas as pl
from jax.experimental.pallas import tpu as pltpu


def _mha_kernel(x_ref, w_ref, b_ref, out_ref, *,
                num_heads, head_dim, seq, tb, group):
    """One grid step = `tb` batch elements, all heads.

    x_ref  : (tb, S, H)       activations (f32)
    w_ref  : (H, 3*NH*D)      packed [Q heads | K heads | V heads] weights (bf16)
    b_ref  : (1, 3*NH*D)      packed biases (f32)
    out_ref: (tb, S, NH*D)    concatenated head outputs
    """
    nhd = num_heads * head_dim

    # Fused QKV projection for all tb*S rows: one wide bf16 MXU matmul with
    # f32 accumulation, + bias.  (tb, S, H) -> (tb*S, H) is layout-free since
    # the wrapper only batches when S % 8 == 0.
    x = x_ref[...].reshape(tb * seq, x_ref.shape[-1]).astype(jnp.bfloat16)
    qkv = jnp.dot(x, w_ref[...], preferred_element_type=jnp.float32)
    qkv = qkv + b_ref[...]                                   # (tb*S, 3*NH*D) f32

    # Fold the (intentional) 1/head_dim logit scale into q: O(S*D) multiply
    # instead of an O(S^2) scale on the scores.  Attention matmul operands are
    # cast to bf16; accumulation stays f32.
    inv_scale = 1.0 / float(head_dim)
    q_all = (qkv[:, 0 * nhd:1 * nhd] * inv_scale).astype(jnp.bfloat16)
    k_all = qkv[:, 1 * nhd:2 * nhd].astype(jnp.bfloat16)
    v_all = qkv[:, 2 * nhd:3 * nhd].astype(jnp.bfloat16)

    for b in range(tb):                        # static loop over batch rows
        r0 = b * seq
        for g0 in range(0, num_heads, group):  # static loop over head groups
            outs = []
            for h in range(g0, g0 + group):
                lo, hi = h * head_dim, (h + 1) * head_dim
                q = q_all[r0:r0 + seq, lo:hi]               # (S, D) bf16
                k = k_all[r0:r0 + seq, lo:hi]               # (S, D) bf16
                v = v_all[r0:r0 + seq, lo:hi]               # (S, D) bf16

                # q @ k.T without materializing the transpose: contract last axes.
                scores = lax.dot_general(
                    q, k, dimension_numbers=(((1,), (1,)), ((), ())),
                    preferred_element_type=jnp.float32)     # (S, S) f32

                # Max-stabilized softmax; exp in f32 (required on v5e).
                scores = scores - jnp.max(scores, axis=-1, keepdims=True)
                e = jnp.exp(scores)
                denom = jnp.sum(e, axis=-1, keepdims=True)  # (S, 1)
                probs = e * pl.reciprocal(denom, approx=True)

                outs.append(jnp.dot(probs.astype(jnp.bfloat16), v,
                                    preferred_element_type=jnp.float32))

            blk = outs[0] if len(outs) == 1 else jnp.concatenate(outs, axis=-1)
            # Immediate store of this head group: bounds live ranges; when
            # group*head_dim is a multiple of 128 this is an unmasked
            # lane-dense store.
            out_ref[b, :, g0 * head_dim:(g0 + group) * head_dim] = (
                blk.astype(out_ref.dtype))


def _largest_divisor_leq(n, limit):
    limit = max(1, min(n, limit))
    for cand in range(limit, 0, -1):
        if n % cand == 0:
            return cand
    return 1


def _head_group_size(num_heads, head_dim):
    # Number of heads processed (and stored) together, chosen so the group
    # lane width is a multiple of 128 when possible (pairs for head_dim=64).
    if head_dim % 128 == 0 or 128 % head_dim != 0:
        g = 1
    else:
        g = 128 // head_dim
    g = min(g, num_heads)
    while num_heads % g:
        g -= 1
    return max(g, 1)


def multi_headed_attention(x, wq, wk, wv, bq, bk, bv, *, num_heads, head_dim):
    """x: [B, S, hidden]; wq/wk/wv: [num_heads, hidden, head_dim] (already W.T
    relative to nn.Linear); bq/bk/bv: [num_heads, 1, head_dim].
    Returns [B, S, num_heads*head_dim]."""
    B, S, H = x.shape
    nhd = num_heads * head_dim

    # Pack per-head weights into one wide matrix [Q heads | K heads | V heads],
    # stored bf16 (MXU-native; halves resident weight VMEM).
    def pack_w(w):                       # (NH, H, D) -> (H, NH*D)
        return jnp.transpose(w, (1, 0, 2)).reshape(H, nhd)

    w_qkv = jnp.concatenate([pack_w(wq), pack_w(wk), pack_w(wv)],
                            axis=1).astype(jnp.bfloat16)          # (H, 3*NH*D)
    b_qkv = jnp.concatenate([bq.reshape(1, nhd), bk.reshape(1, nhd),
                             bv.reshape(1, nhd)],
                            axis=1).astype(jnp.float32)           # (1, 3*NH*D)

    # Batch TB elements per grid step so the fused QKV matmul fills ~256 MXU
    # rows (v6e/v7x) and per-step overhead is amortized.  Only batch when
    # S % 8 == 0 so the in-kernel (TB,S,H)->(TB*S,H) reshape is layout-free.
    tb = _largest_divisor_leq(B, max(1, 256 // S)) if S % 8 == 0 else 1
    group = _head_group_size(num_heads, head_dim)

    kernel = functools.partial(_mha_kernel, num_heads=num_heads,
                               head_dim=head_dim, seq=S, tb=tb, group=group)

    # VMEM budget from actual block sizes: resident weights/bias, double-
    # buffered x/out blocks, QKV activations, and one group of (S,S) tiles.
    est = (w_qkv.size * 2 + b_qkv.size * 4
           + 2 * tb * S * H * x.dtype.itemsize
           + 2 * tb * S * nhd * x.dtype.itemsize
           + tb * S * 3 * nhd * (4 + 2)
           + 4 * group * S * S * 4)
    vmem_limit = int(min(max(2 * est + (2 << 20), 32 << 20), 56 << 20))

    def build(weight_pipeline_mode):
        w_kwargs = ({} if weight_pipeline_mode is None
                    else {"pipeline_mode": weight_pipeline_mode})
        return pl.pallas_call(
            kernel,
            out_shape=jax.ShapeDtypeStruct((B, S, nhd), x.dtype),
            grid_spec=pltpu.PrefetchScalarGridSpec(
                num_scalar_prefetch=0,
                grid=(B // tb,),
                in_specs=[
                    # x: TB batch elements per step.
                    pl.BlockSpec((tb, S, H), lambda i: (i, 0, 0)),
                    # Packed weights/bias: constant index_map -> VMEM-resident.
                    pl.BlockSpec((H, 3 * nhd), lambda i: (0, 0), **w_kwargs),
                    pl.BlockSpec((1, 3 * nhd), lambda i: (0, 0), **w_kwargs),
                ],
                out_specs=pl.BlockSpec((tb, S, nhd), lambda i: (i, 0, 0)),
            ),
            compiler_params=pltpu.CompilerParams(
                dimension_semantics=("parallel",),
                vmem_limit_bytes=vmem_limit,
            ),
        )

    try:
        # Single-buffer the never-changing weight/bias blocks (saves VMEM;
        # matters on v7x's 64 MiB/TC with ViT-L-class weights).
        out = build(pl.Buffered(1))(x, w_qkv, b_qkv)
    except Exception:
        # Fallback for jax versions that reject Buffered(1) on the top-level
        # grid pipeline; identical semantics, just double-buffered weights.
        out = build(None)(x, w_qkv, b_qkv)
    return out


def _reference(x, wq, wk, wv, bq, bk, bv, num_heads, head_dim):
    outs = []
    for h in range(num_heads):
        q = x @ wq[h] + bq[h]
        k = x @ wk[h] + bk[h]
        v = x @ wv[h] + bv[h]
        scores = jnp.einsum("bsd,btd->bst", q, k) / float(head_dim)
        attn = jax.nn.softmax(scores, axis=-1)
        outs.append(jnp.einsum("bst,btd->bsd", attn, v))
    return jnp.concatenate(outs, axis=-1)


if __name__ == "__main__":
    # Small shapes consistent with the module's forward.
    B, S, HIDDEN, NUM_HEADS = 2, 8, 32, 2
    HEAD_DIM = HIDDEN // NUM_HEADS

    key = jax.random.PRNGKey(0)
    kx, kq, kk, kv, kbq, kbk, kbv = jax.random.split(key, 7)

    x = jax.random.normal(kx, (B, S, HIDDEN), dtype=jnp.float32)

    # Deterministic parameter init (nn.Linear-style uniform +-1/sqrt(fan_in)).
    bound = 1.0 / jnp.sqrt(jnp.float32(HIDDEN))
    wq = jax.random.uniform(kq, (NUM_HEADS, HIDDEN, HEAD_DIM), jnp.float32, -bound, bound)
    wk = jax.random.uniform(kk, (NUM_HEADS, HIDDEN, HEAD_DIM), jnp.float32, -bound, bound)
    wv = jax.random.uniform(kv, (NUM_HEADS, HIDDEN, HEAD_DIM), jnp.float32, -bound, bound)
    bq = jax.random.uniform(kbq, (NUM_HEADS, 1, HEAD_DIM), jnp.float32, -bound, bound)
    bk = jax.random.uniform(kbk, (NUM_HEADS, 1, HEAD_DIM), jnp.float32, -bound, bound)
    bv = jax.random.uniform(kbv, (NUM_HEADS, 1, HEAD_DIM), jnp.float32, -bound, bound)

    out = multi_headed_attention(x, wq, wk, wv, bq, bk, bv,
                                 num_heads=NUM_HEADS, head_dim=HEAD_DIM)
    out = jax.block_until_ready(out)

    ref = _reference(x, wq, wk, wv, bq, bk, bv, NUM_HEADS, HEAD_DIM)
    assert out.shape == (B, S, HIDDEN), out.shape
    # Relaxed tolerance: bf16 MXU operands (f32 accumulation) + EUP approximate
    # reciprocal in the softmax denominator; error stays at the few-1e-3 level.
    err = float(jnp.max(jnp.abs(out - ref)))
    assert jnp.allclose(out, ref, atol=2e-2, rtol=2e-2), err

    print("KERNEL_OK")
</pallas_src>

<mosaic_0001>
module attributes {stable_mosaic.version = 11 : i64} {
  func.func @_mha_kernel(%arg0: i32, %arg1: memref<2x8x32xf32, #tpu.memory_space<vmem>>, %arg2: memref<32x96xbf16, #tpu.memory_space<vmem>>, %arg3: memref<1x96xf32, #tpu.memory_space<vmem>>, %arg4: memref<2x8x32xf32, #tpu.memory_space<vmem>>) attributes {dimension_semantics = [#tpu.dimension_semantics<parallel>], iteration_bounds = array<i64: 1>, scalar_prefetch = 0 : i64, scratch_operands = 0 : i64, tpu.core_type = #tpu.core_type<tc>, window_params = [{transform_indices = @transform_0, window_bounds = array<i64: 2, 8, 32>}, {pipeline_mode = #tpu.pipeline_mode<synchronous>, transform_indices = @transform_1, window_bounds = array<i64: 32, 96>}, {pipeline_mode = #tpu.pipeline_mode<synchronous>, transform_indices = @transform_2, window_bounds = array<i64: 1, 96>}, {transform_indices = @transform_3, window_bounds = array<i64: 2, 8, 32>}]} {
    %c0 = arith.constant 0 : index
    %c0_0 = arith.constant 0 : index
    %c0_1 = arith.constant 0 : index
    %0 = vector.load %arg1[%c0, %c0_0, %c0_1] : memref<2x8x32xf32, #tpu.memory_space<vmem>>, vector<2x8x32xf32>
    %1 = vector.shape_cast %0 : vector<2x8x32xf32> to vector<16x32xf32>
    %2 = arith.truncf %1 : vector<16x32xf32> to vector<16x32xbf16>
    %c0_2 = arith.constant 0 : index
    %c0_3 = arith.constant 0 : index
    %3 = vector.load %arg2[%c0_2, %c0_3] : memref<32x96xbf16, #tpu.memory_space<vmem>>, vector<32x96xbf16>
    %cst = arith.constant dense<0.000000e+00> : vector<16x96xf32>
    %4 = tpu.matmul %2, %3, %cst {dimension_numbers = #tpu.dot_dimension_numbers<[1], [0], [0], [1], [0, 0, 1, 1], [], []>} : vector<16x32xbf16>, vector<32x96xbf16>, vector<16x96xf32> -> vector<16x96xf32>
    %c0_4 = arith.constant 0 : index
    %c0_5 = arith.constant 0 : index
    %5 = vector.load %arg3[%c0_4, %c0_5] : memref<1x96xf32, #tpu.memory_space<vmem>>, vector<1x96xf32>
    %6 = vector.broadcast %5 : vector<1x96xf32> to vector<16x96xf32>
    %7 = arith.addf %4, %6 : vector<16x96xf32>
    %8 = vector.extract_strided_slice %7 {offsets = [0, 0], sizes = [16, 32], strides = [1, 1]} : vector<16x96xf32> to vector<16x32xf32>
    %cst_6 = arith.constant 6.250000e-02 : f32
    %9 = vector.broadcast %cst_6 : f32 to vector<16x32xf32>
    %10 = arith.mulf %8, %9 : vector<16x32xf32>
    %11 = arith.truncf %10 : vector<16x32xf32> to vector<16x32xbf16>
    %12 = vector.extract_strided_slice %7 {offsets = [0, 32], sizes = [16, 32], strides = [1, 1]} : vector<16x96xf32> to vector<16x32xf32>
    %13 = arith.truncf %12 : vector<16x32xf32> to vector<16x32xbf16>
    %14 = vector.extract_strided_slice %7 {offsets = [0, 64], sizes = [16, 32], strides = [1, 1]} : vector<16x96xf32> to vector<16x32xf32>
    %15 = arith.truncf %14 : vector<16x32xf32> to vector<16x32xbf16>
    %16 = vector.extract_strided_slice %11 {offsets = [0, 0], sizes = [8, 16], strides = [1, 1]} : vector<16x32xbf16> to vector<8x16xbf16>
    %17 = vector.extract_strided_slice %13 {offsets = [0, 0], sizes = [8, 16], strides = [1, 1]} : vector<16x32xbf16> to vector<8x16xbf16>
    %18 = vector.extract_strided_slice %15 {offsets = [0, 0], sizes = [8, 16], strides = [1, 1]} : vector<16x32xbf16> to vector<8x16xbf16>
    %cst_7 = arith.constant dense<0.000000e+00> : vector<8x8xf32>
    %19 = tpu.matmul %16, %17, %cst_7 {dimension_numbers = #tpu.dot_dimension_numbers<[1], [1], [0], [0], [0, 0, 1, 0], [], []>} : vector<8x16xbf16>, vector<8x16xbf16>, vector<8x8xf32> -> vector<8x8xf32>
    %cst_8 = arith.constant dense<0xFF800000> : vector<8xf32>
    %20 = vector.multi_reduction <maximumf>, %19, %cst_8 [1] : vector<8x8xf32> to vector<8xf32>
    %21 = vector.shape_cast %20 : vector<8xf32> to vector<8x1xf32>
    %22 = vector.broadcast %21 : vector<8x1xf32> to vector<8x8xf32>
    %23 = arith.subf %19, %22 : vector<8x8xf32>
    %24 = math.exp %23 : vector<8x8xf32>
    %cst_9 = arith.constant dense<0.000000e+00> : vector<8xf32>
    %25 = vector.multi_reduction <add>, %24, %cst_9 [1] : vector<8x8xf32> to vector<8xf32>
    %26 = vector.shape_cast %25 : vector<8xf32> to vector<8x1xf32>
    %27 = tpu.reciprocal %26 {approx = true} : vector<8x1xf32> -> vector<8x1xf32>
    %28 = vector.broadcast %27 : vector<8x1xf32> to vector<8x8xf32>
    %29 = arith.mulf %24, %28 : vector<8x8xf32>
    %30 = arith.truncf %29 : vector<8x8xf32> to vector<8x8xbf16>
    %cst_10 = arith.constant dense<0.000000e+00> : vector<8x16xf32>
    %31 = tpu.matmul %30, %18, %cst_10 {dimension_numbers = #tpu.dot_dimension_numbers<[1], [0], [0], [1], [0, 0, 1, 1], [], []>} : vector<8x8xbf16>, vector<8x16xbf16>, vector<8x16xf32> -> vector<8x16xf32>
    %32 = vector.extract_strided_slice %11 {offsets = [0, 16], sizes = [8, 16], strides = [1, 1]} : vector<16x32xbf16> to vector<8x16xbf16>
    %33 = vector.extract_strided_slice %13 {offsets = [0, 16], sizes = [8, 16], strides = [1, 1]} : vector<16x32xbf16> to vector<8x16xbf16>
    %34 = vector.extract_strided_slice %15 {offsets = [0, 16], sizes = [8, 16], strides = [1, 1]} : vector<16x32xbf16> to vector<8x16xbf16>
    %cst_11 = arith.constant dense<0.000000e+00> : vector<8x8xf32>
    %35 = tpu.matmul %32, %33, %cst_11 {dimension_numbers = #tpu.dot_dimension_numbers<[1], [1], [0], [0], [0, 0, 1, 0], [], []>} : vector<8x16xbf16>, vector<8x16xbf16>, vector<8x8xf32> -> vector<8x8xf32>
    %cst_12 = arith.constant dense<0xFF800000> : vector<8xf32>
    %36 = vector.multi_reduction <maximumf>, %35, %cst_12 [1] : vector<8x8xf32> to vector<8xf32>
    %37 = vector.shape_cast %36 : vector<8xf32> to vector<8x1xf32>
    %38 = vector.broadcast %37 : vector<8x1xf32> to vector<8x8xf32>
    %39 = arith.subf %35, %38 : vector<8x8xf32>
    %40 = math.exp %39 : vector<8x8xf32>
    %cst_13 = arith.constant dense<0.000000e+00> : vector<8xf32>
    %41 = vector.multi_reduction <add>, %40, %cst_13 [1] : vector<8x8xf32> to vector<8xf32>
    %42 = vector.shape_cast %41 : vector<8xf32> to vector<8x1xf32>
    %43 = tpu.reciprocal %42 {approx = true} : vector<8x1xf32> -> vector<8x1xf32>
    %44 = vector.broadcast %43 : vector<8x1xf32> to vector<8x8xf32>
    %45 = arith.mulf %40, %44 : vector<8x8xf32>
    %46 = arith.truncf %45 : vector<8x8xf32> to vector<8x8xbf16>
    %cst_14 = arith.constant dense<0.000000e+00> : vector<8x16xf32>
    %47 = tpu.matmul %46, %34, %cst_14 {dimension_numbers = #tpu.dot_dimension_numbers<[1], [0], [0], [1], [0, 0, 1, 1], [], []>} : vector<8x8xbf16>, vector<8x16xbf16>, vector<8x16xf32> -> vector<8x16xf32>
    %48 = tpu.concatenate %31, %47 in 1 : vector<8x16xf32>, vector<8x16xf32> -> vector<8x32xf32>
    %c0_15 = arith.constant 0 : index
    %c0_16 = arith.constant 0 : index
    %c0_17 = arith.constant 0 : index
    %49 = vector.load %arg4[%c0_15, %c0_16, %c0_17] : memref<2x8x32xf32, #tpu.memory_space<vmem>>, vector<1x8x32xf32>
    %50 = vector.shape_cast %49 : vector<1x8x32xf32> to vector<8x32xf32>
    %51 = vector.shape_cast %48 : vector<8x32xf32> to vector<1x8x32xf32>
    tpu.vector_store %arg4[%c0_15, %c0_16, %c0_17], %51 {strides = array<i32>} : memref<2x8x32xf32, #tpu.memory_space<vmem>>, vector<1x8x32xf32>,
    %52 = vector.extract_strided_slice %11 {offsets = [8, 0], sizes = [8, 16], strides = [1, 1]} : vector<16x32xbf16> to vector<8x16xbf16>
    %53 = vector.extract_strided_slice %13 {offsets = [8, 0], sizes = [8, 16], strides = [1, 1]} : vector<16x32xbf16> to vector<8x16xbf16>
    %54 = vector.extract_strided_slice %15 {offsets = [8, 0], sizes = [8, 16], strides = [1, 1]} : vector<16x32xbf16> to vector<8x16xbf16>
    %cst_18 = arith.constant dense<0.000000e+00> : vector<8x8xf32>
    %55 = tpu.matmul %52, %53, %cst_18 {dimension_numbers = #tpu.dot_dimension_numbers<[1], [1], [0], [0], [0, 0, 1, 0], [], []>} : vector<8x16xbf16>, vector<8x16xbf16>, vector<8x8xf32> -> vector<8x8xf32>
    %cst_19 = arith.constant dense<0xFF800000> : vector<8xf32>
    %56 = vector.multi_reduction <maximumf>, %55, %cst_19 [1] : vector<8x8xf32> to vector<8xf32>
    %57 = vector.shape_cast %56 : vector<8xf32> to vector<8x1xf32>
    %58 = vector.broadcast %57 : vector<8x1xf32> to vector<8x8xf32>
    %59 = arith.subf %55, %58 : vector<8x8xf32>
    %60 = math.exp %59 : vector<8x8xf32>
    %cst_20 = arith.constant dense<0.000000e+00> : vector<8xf32>
    %61 = vector.multi_reduction <add>, %60, %cst_20 [1] : vector<8x8xf32> to vector<8xf32>
    %62 = vector.shape_cast %61 : vector<8xf32> to vector<8x1xf32>
    %63 = tpu.reciprocal %62 {approx = true} : vector<8x1xf32> -> vector<8x1xf32>
    %64 = vector.broadcast %63 : vector<8x1xf32> to vector<8x8xf32>
    %65 = arith.mulf %60, %64 : vector<8x8xf32>
    %66 = arith.truncf %65 : vector<8x8xf32> to vector<8x8xbf16>
    %cst_21 = arith.constant dense<0.000000e+00> : vector<8x16xf32>
    %67 = tpu.matmul %66, %54, %cst_21 {dimension_numbers = #tpu.dot_dimension_numbers<[1], [0], [0], [1], [0, 0, 1, 1], [], []>} : vector<8x8xbf16>, vector<8x16xbf16>, vector<8x16xf32> -> vector<8x16xf32>
    %68 = vector.extract_strided_slice %11 {offsets = [8, 16], sizes = [8, 16], strides = [1, 1]} : vector<16x32xbf16> to vector<8x16xbf16>
    %69 = vector.extract_strided_slice %13 {offsets = [8, 16], sizes = [8, 16], strides = [1, 1]} : vector<16x32xbf16> to vector<8x16xbf16>
    %70 = vector.extract_strided_slice %15 {offsets = [8, 16], sizes = [8, 16], strides = [1, 1]} : vector<16x32xbf16> to vector<8x16xbf16>
    %cst_22 = arith.constant dense<0.000000e+00> : vector<8x8xf32>
    %71 = tpu.matmul %68, %69, %cst_22 {dimension_numbers = #tpu.dot_dimension_numbers<[1], [1], [0], [0], [0, 0, 1, 0], [], []>} : vector<8x16xbf16>, vector<8x16xbf16>, vector<8x8xf32> -> vector<8x8xf32>
    %cst_23 = arith.constant dense<0xFF800000> : vector<8xf32>
    %72 = vector.multi_reduction <maximumf>, %71, %cst_23 [1] : vector<8x8xf32> to vector<8xf32>
    %73 = vector.shape_cast %72 : vector<8xf32> to vector<8x1xf32>
    %74 = vector.broadcast %73 : vector<8x1xf32> to vector<8x8xf32>
    %75 = arith.subf %71, %74 : vector<8x8xf32>
    %76 = math.exp %75 : vector<8x8xf32>
    %cst_24 = arith.constant dense<0.000000e+00> : vector<8xf32>
    %77 = vector.multi_reduction <add>, %76, %cst_24 [1] : vector<8x8xf32> to vector<8xf32>
    %78 = vector.shape_cast %77 : vector<8xf32> to vector<8x1xf32>
    %79 = tpu.reciprocal %78 {approx = true} : vector<8x1xf32> -> vector<8x1xf32>
    %80 = vector.broadcast %79 : vector<8x1xf32> to vector<8x8xf32>
    %81 = arith.mulf %76, %80 : vector<8x8xf32>
    %82 = arith.truncf %81 : vector<8x8xf32> to vector<8x8xbf16>
    %cst_25 = arith.constant dense<0.000000e+00> : vector<8x16xf32>
    %83 = tpu.matmul %82, %70, %cst_25 {dimension_numbers = #tpu.dot_dimension_numbers<[1], [0], [0], [1], [0, 0, 1, 1], [], []>} : vector<8x8xbf16>, vector<8x16xbf16>, vector<8x16xf32> -> vector<8x16xf32>
    %84 = tpu.concatenate %67, %83 in 1 : vector<8x16xf32>, vector<8x16xf32> -> vector<8x32xf32>
    %c1 = arith.constant 1 : index
    %c0_26 = arith.constant 0 : index
    %c0_27 = arith.constant 0 : index
    %85 = vector.load %arg4[%c1, %c0_26, %c0_27] : memref<2x8x32xf32, #tpu.memory_space<vmem>>, vector<1x8x32xf32>
    %86 = vector.shape_cast %85 : vector<1x8x32xf32> to vector<8x32xf32>
    %87 = vector.shape_cast %84 : vector<8x32xf32> to vector<1x8x32xf32>
    tpu.vector_store %arg4[%c1, %c0_26, %c0_27], %87 {strides = array<i32>} : memref<2x8x32xf32, #tpu.memory_space<vmem>>, vector<1x8x32xf32>,
    return
  }
  func.func @transform_0(%arg0: i32) -> (i32, i32, i32) {
    %c0_i32 = arith.constant 0 : i32
    %c0_i32_0 = arith.constant 0 : i32
    %c0_i32_1 = arith.constant 0 : i32
    return %arg0, %c0_i32, %c0_i32_0 : i32, i32, i32
  }
  func.func @transform_1(%arg0: i32) -> (i32, i32) {
    %c0_i32 = arith.constant 0 : i32
    %c0_i32_0 = arith.constant 0 : i32
    %c0_i32_1 = arith.constant 0 : i32
    return %c0_i32, %c0_i32_0 : i32, i32
  }
  func.func @transform_2(%arg0: i32) -> (i32, i32) {
    %c0_i32 = arith.constant 0 : i32
    %c0_i32_0 = arith.constant 0 : i32
    %c0_i32_1 = arith.constant 0 : i32
    return %c0_i32, %c0_i32_0 : i32, i32
  }
  func.func @transform_3(%arg0: i32) -> (i32, i32, i32) {
    %c0_i32 = arith.constant 0 : i32
    %c0_i32_0 = arith.constant 0 : i32
    %c0_i32_1 = arith.constant 0 : i32
    return %arg0, %c0_i32, %c0_i32_0 : i32, i32, i32
  }
}

module attributes {stable_mosaic.version = 11 : i64} {
  func.func @_mha_kernel(%arg0: i32, %arg1: memref<2x8x32xf32, #tpu.memory_space<vmem>>, %arg2: memref<32x96xbf16, #tpu.memory_space<vmem>>, %arg3: memref<1x96xf32, #tpu.memory_space<vmem>>, %arg4: memref<2x8x32xf32, #tpu.memory_space<vmem>>) attributes {dimension_semantics = [#tpu.dimension_semantics<parallel>], iteration_bounds = array<i64: 1>, scalar_prefetch = 0 : i64, scratch_operands = 0 : i64, tpu.core_type = #tpu.core_type<tc>, window_params = [{transform_indices = @transform_0, window_bounds = array<i64: 2, 8, 32>}, {pipeline_mode = #tpu.pipeline_mode<synchronous>, transform_indices = @transform_1, window_bounds = array<i64: 32, 96>}, {pipeline_mode = #tpu.pipeline_mode<synchronous>, transform_indices = @transform_2, window_bounds = array<i64: 1, 96>}, {transform_indices = @transform_3, window_bounds = array<i64: 2, 8, 32>}]} {
    %c0 = arith.constant 0 : index
    %c0_0 = arith.constant 0 : index
    %c0_1 = arith.constant 0 : index
    %0 = vector.load %arg1[%c0, %c0_0, %c0_1] : memref<2x8x32xf32, #tpu.memory_space<vmem>>, vector<2x8x32xf32>
    %1 = vector.shape_cast %0 : vector<2x8x32xf32> to vector<16x32xf32>
    %2 = arith.truncf %1 : vector<16x32xf32> to vector<16x32xbf16>
    %c0_2 = arith.constant 0 : index
    %c0_3 = arith.constant 0 : index
    %3 = vector.load %arg2[%c0_2, %c0_3] : memref<32x96xbf16, #tpu.memory_space<vmem>>, vector<32x96xbf16>
    %cst = arith.constant dense<0.000000e+00> : vector<16x96xf32>
    %4 = tpu.matmul %2, %3, %cst {dimension_numbers = #tpu.dot_dimension_numbers<[1], [0], [0], [1], [0, 0, 1, 1], [], []>} : vector<16x32xbf16>, vector<32x96xbf16>, vector<16x96xf32> -> vector<16x96xf32>
    %c0_4 = arith.constant 0 : index
    %c0_5 = arith.constant 0 : index
    %5 = vector.load %arg3[%c0_4, %c0_5] : memref<1x96xf32, #tpu.memory_space<vmem>>, vector<1x96xf32>
    %6 = vector.broadcast %5 : vector<1x96xf32> to vector<16x96xf32>
    %7 = arith.addf %4, %6 : vector<16x96xf32>
    %8 = vector.extract_strided_slice %7 {offsets = [0, 0], sizes = [16, 32], strides = [1, 1]} : vector<16x96xf32> to vector<16x32xf32>
    %cst_6 = arith.constant 6.250000e-02 : f32
    %9 = vector.broadcast %cst_6 : f32 to vector<16x32xf32>
    %10 = arith.mulf %8, %9 : vector<16x32xf32>
    %11 = arith.truncf %10 : vector<16x32xf32> to vector<16x32xbf16>
    %12 = vector.extract_strided_slice %7 {offsets = [0, 32], sizes = [16, 32], strides = [1, 1]} : vector<16x96xf32> to vector<16x32xf32>
    %13 = arith.truncf %12 : vector<16x32xf32> to vector<16x32xbf16>
    %14 = vector.extract_strided_slice %7 {offsets = [0, 64], sizes = [16, 32], strides = [1, 1]} : vector<16x96xf32> to vector<16x32xf32>
    %15 = arith.truncf %14 : vector<16x32xf32> to vector<16x32xbf16>
    %16 = vector.extract_strided_slice %11 {offsets = [0, 0], sizes = [8, 16], strides = [1, 1]} : vector<16x32xbf16> to vector<8x16xbf16>
    %17 = vector.extract_strided_slice %13 {offsets = [0, 0], sizes = [8, 16], strides = [1, 1]} : vector<16x32xbf16> to vector<8x16xbf16>
    %18 = vector.extract_strided_slice %15 {offsets = [0, 0], sizes = [8, 16], strides = [1, 1]} : vector<16x32xbf16> to vector<8x16xbf16>
    %cst_7 = arith.constant dense<0.000000e+00> : vector<8x8xf32>
    %19 = tpu.matmul %16, %17, %cst_7 {dimension_numbers = #tpu.dot_dimension_numbers<[1], [1], [0], [0], [0, 0, 1, 0], [], []>} : vector<8x16xbf16>, vector<8x16xbf16>, vector<8x8xf32> -> vector<8x8xf32>
    %cst_8 = arith.constant dense<0xFF800000> : vector<8xf32>
    %20 = vector.multi_reduction <maximumf>, %19, %cst_8 [1] : vector<8x8xf32> to vector<8xf32>
    %21 = vector.shape_cast %20 : vector<8xf32> to vector<8x1xf32>
    %22 = vector.broadcast %21 : vector<8x1xf32> to vector<8x8xf32>
    %23 = arith.subf %19, %22 : vector<8x8xf32>
    %24 = math.exp %23 : vector<8x8xf32>
    %cst_9 = arith.constant dense<0.000000e+00> : vector<8xf32>
    %25 = vector.multi_reduction <add>, %24, %cst_9 [1] : vector<8x8xf32> to vector<8xf32>
    %26 = vector.shape_cast %25 : vector<8xf32> to vector<8x1xf32>
    %27 = tpu.reciprocal %26 {approx = true} : vector<8x1xf32> -> vector<8x1xf32>
    %28 = vector.broadcast %27 : vector<8x1xf32> to vector<8x8xf32>
    %29 = arith.mulf %24, %28 : vector<8x8xf32>
    %30 = arith.truncf %29 : vector<8x8xf32> to vector<8x8xbf16>
    %cst_10 = arith.constant dense<0.000000e+00> : vector<8x16xf32>
    %31 = tpu.matmul %30, %18, %cst_10 {dimension_numbers = #tpu.dot_dimension_numbers<[1], [0], [0], [1], [0, 0, 1, 1], [], []>} : vector<8x8xbf16>, vector<8x16xbf16>, vector<8x16xf32> -> vector<8x16xf32>
    %32 = vector.extract_strided_slice %11 {offsets = [0, 16], sizes = [8, 16], strides = [1, 1]} : vector<16x32xbf16> to vector<8x16xbf16>
    %33 = vector.extract_strided_slice %13 {offsets = [0, 16], sizes = [8, 16], strides = [1, 1]} : vector<16x32xbf16> to vector<8x16xbf16>
    %34 = vector.extract_strided_slice %15 {offsets = [0, 16], sizes = [8, 16], strides = [1, 1]} : vector<16x32xbf16> to vector<8x16xbf16>
    %cst_11 = arith.constant dense<0.000000e+00> : vector<8x8xf32>
    %35 = tpu.matmul %32, %33, %cst_11 {dimension_numbers = #tpu.dot_dimension_numbers<[1], [1], [0], [0], [0, 0, 1, 0], [], []>} : vector<8x16xbf16>, vector<8x16xbf16>, vector<8x8xf32> -> vector<8x8xf32>
    %cst_12 = arith.constant dense<0xFF800000> : vector<8xf32>
    %36 = vector.multi_reduction <maximumf>, %35, %cst_12 [1] : vector<8x8xf32> to vector<8xf32>
    %37 = vector.shape_cast %36 : vector<8xf32> to vector<8x1xf32>
    %38 = vector.broadcast %37 : vector<8x1xf32> to vector<8x8xf32>
    %39 = arith.subf %35, %38 : vector<8x8xf32>
    %40 = math.exp %39 : vector<8x8xf32>
    %cst_13 = arith.constant dense<0.000000e+00> : vector<8xf32>
    %41 = vector.multi_reduction <add>, %40, %cst_13 [1] : vector<8x8xf32> to vector<8xf32>
    %42 = vector.shape_cast %41 : vector<8xf32> to vector<8x1xf32>
    %43 = tpu.reciprocal %42 {approx = true} : vector<8x1xf32> -> vector<8x1xf32>
    %44 = vector.broadcast %43 : vector<8x1xf32> to vector<8x8xf32>
    %45 = arith.mulf %40, %44 : vector<8x8xf32>
    %46 = arith.truncf %45 : vector<8x8xf32> to vector<8x8xbf16>
    %cst_14 = arith.constant dense<0.000000e+00> : vector<8x16xf32>
    %47 = tpu.matmul %46, %34, %cst_14 {dimension_numbers = #tpu.dot_dimension_numbers<[1], [0], [0], [1], [0, 0, 1, 1], [], []>} : vector<8x8xbf16>, vector<8x16xbf16>, vector<8x16xf32> -> vector<8x16xf32>
    %48 = tpu.concatenate %31, %47 in 1 : vector<8x16xf32>, vector<8x16xf32> -> vector<8x32xf32>
    %c0_15 = arith.constant 0 : index
    %c0_16 = arith.constant 0 : index
    %c0_17 = arith.constant 0 : index
    %49 = vector.load %arg4[%c0_15, %c0_16, %c0_17] : memref<2x8x32xf32, #tpu.memory_space<vmem>>, vector<1x8x32xf32>
    %50 = vector.shape_cast %49 : vector<1x8x32xf32> to vector<8x32xf32>
    %51 = vector.shape_cast %48 : vector<8x32xf32> to vector<1x8x32xf32>
    tpu.vector_store %arg4[%c0_15, %c0_16, %c0_17], %51 {strides = array<i32>} : memref<2x8x32xf32, #tpu.memory_space<vmem>>, vector<1x8x32xf32>,
    %52 = vector.extract_strided_slice %11 {offsets = [8, 0], sizes = [8, 16], strides = [1, 1]} : vector<16x32xbf16> to vector<8x16xbf16>
    %53 = vector.extract_strided_slice %13 {offsets = [8, 0], sizes = [8, 16], strides = [1, 1]} : vector<16x32xbf16> to vector<8x16xbf16>
    %54 = vector.extract_strided_slice %15 {offsets = [8, 0], sizes = [8, 16], strides = [1, 1]} : vector<16x32xbf16> to vector<8x16xbf16>
    %cst_18 = arith.constant dense<0.000000e+00> : vector<8x8xf32>
    %55 = tpu.matmul %52, %53, %cst_18 {dimension_numbers = #tpu.dot_dimension_numbers<[1], [1], [0], [0], [0, 0, 1, 0], [], []>} : vector<8x16xbf16>, vector<8x16xbf16>, vector<8x8xf32> -> vector<8x8xf32>
    %cst_19 = arith.constant dense<0xFF800000> : vector<8xf32>
    %56 = vector.multi_reduction <maximumf>, %55, %cst_19 [1] : vector<8x8xf32> to vector<8xf32>
    %57 = vector.shape_cast %56 : vector<8xf32> to vector<8x1xf32>
    %58 = vector.broadcast %57 : vector<8x1xf32> to vector<8x8xf32>
    %59 = arith.subf %55, %58 : vector<8x8xf32>
    %60 = math.exp %59 : vector<8x8xf32>
    %cst_20 = arith.constant dense<0.000000e+00> : vector<8xf32>
    %61 = vector.multi_reduction <add>, %60, %cst_20 [1] : vector<8x8xf32> to vector<8xf32>
    %62 = vector.shape_cast %61 : vector<8xf32> to vector<8x1xf32>
    %63 = tpu.reciprocal %62 {approx = true} : vector<8x1xf32> -> vector<8x1xf32>
    %64 = vector.broadcast %63 : vector<8x1xf32> to vector<8x8xf32>
    %65 = arith.mulf %60, %64 : vector<8x8xf32>
    %66 = arith.truncf %65 : vector<8x8xf32> to vector<8x8xbf16>
    %cst_21 = arith.constant dense<0.000000e+00> : vector<8x16xf32>
    %67 = tpu.matmul %66, %54, %cst_21 {dimension_numbers = #tpu.dot_dimension_numbers<[1], [0], [0], [1], [0, 0, 1, 1], [], []>} : vector<8x8xbf16>, vector<8x16xbf16>, vector<8x16xf32> -> vector<8x16xf32>
    %68 = vector.extract_strided_slice %11 {offsets = [8, 16], sizes = [8, 16], strides = [1, 1]} : vector<16x32xbf16> to vector<8x16xbf16>
    %69 = vector.extract_strided_slice %13 {offsets = [8, 16], sizes = [8, 16], strides = [1, 1]} : vector<16x32xbf16> to vector<8x16xbf16>
    %70 = vector.extract_strided_slice %15 {offsets = [8, 16], sizes = [8, 16], strides = [1, 1]} : vector<16x32xbf16> to vector<8x16xbf16>
    %cst_22 = arith.constant dense<0.000000e+00> : vector<8x8xf32>
    %71 = tpu.matmul %68, %69, %cst_22 {dimension_numbers = #tpu.dot_dimension_numbers<[1], [1], [0], [0], [0, 0, 1, 0], [], []>} : vector<8x16xbf16>, vector<8x16xbf16>, vector<8x8xf32> -> vector<8x8xf32>
    %cst_23 = arith.constant dense<0xFF800000> : vector<8xf32>
    %72 = vector.multi_reduction <maximumf>, %71, %cst_23 [1] : vector<8x8xf32> to vector<8xf32>
    %73 = vector.shape_cast %72 : vector<8xf32> to vector<8x1xf32>
    %74 = vector.broadcast %73 : vector<8x1xf32> to vector<8x8xf32>
    %75 = arith.subf %71, %74 : vector<8x8xf32>
    %76 = math.exp %75 : vector<8x8xf32>
    %cst_24 = arith.constant dense<0.000000e+00> : vector<8xf32>
    %77 = vector.multi_reduction <add>, %76, %cst_24 [1] : vector<8x8xf32> to vector<8xf32>
    %78 = vector.shape_cast %77 : vector<8xf32> to vector<8x1xf32>
    %79 = tpu.reciprocal %78 {approx = true} : vector<8x1xf32> -> vector<8x1xf32>
    %80 = vector.broadcast %79 : vector<8x1xf32> to vector<8x8xf32>
    %81 = arith.mulf %76, %80 : vector<8x8xf32>
    %82 = arith.truncf %81 : vector<8x8xf32> to vector<8x8xbf16>
    %cst_25 = arith.constant dense<0.000000e+00> : vector<8x16xf32>
    %83 = tpu.matmul %82, %70, %cst_25 {dimension_numbers = #tpu.dot_dimension_numbers<[1], [0], [0], [1], [0, 0, 1, 1], [], []>} : vector<8x8xbf16>, vector<8x16xbf16>, vector<8x16xf32> -> vector<8x16xf32>
    %84 = tpu.concatenate %67, %83 in 1 : vector<8x16xf32>, vector<8x16xf32> -> vector<8x32xf32>
    %c1 = arith.constant 1 : index
    %c0_26 = arith.constant 0 : index
    %c0_27 = arith.constant 0 : index
    %85 = vector.load %arg4[%c1, %c0_26, %c0_27] : memref<2x8x32xf32, #tpu.memory_space<vmem>>, vector<1x8x32xf32>
    %86 = vector.shape_cast %85 : vector<1x8x32xf32> to vector<8x32xf32>
    %87 = vector.shape_cast %84 : vector<8x32xf32> to vector<1x8x32xf32>
    tpu.vector_store %arg4[%c1, %c0_26, %c0_27], %87 {strides = array<i32>} : memref<2x8x32xf32, #tpu.memory_space<vmem>>, vector<1x8x32xf32>,
    return
  }
  func.func @transform_0(%arg0: i32) -> (i32, i32, i32) {
    %c0_i32 = arith.constant 0 : i32
    %c0_i32_0 = arith.constant 0 : i32
    %c0_i32_1 = arith.constant 0 : i32
    return %arg0, %c0_i32, %c0_i32_0 : i32, i32, i32
  }
  func.func @transform_1(%arg0: i32) -> (i32, i32) {
    %c0_i32 = arith.constant 0 : i32
    %c0_i32_0 = arith.constant 0 : i32
    %c0_i32_1 = arith.constant 0 : i32
    return %c0_i32, %c0_i32_0 : i32, i32
  }
  func.func @transform_2(%arg0: i32) -> (i32, i32) {
    %c0_i32 = arith.constant 0 : i32
    %c0_i32_0 = arith.constant 0 : i32
    %c0_i32_1 = arith.constant 0 : i32
    return %c0_i32, %c0_i32_0 : i32, i32
  }
  func.func @transform_3(%arg0: i32) -> (i32, i32, i32) {
    %c0_i32 = arith.constant 0 : i32
    %c0_i32_0 = arith.constant 0 : i32
    %c0_i32_1 = arith.constant 0 : i32
    return %arg0, %c0_i32, %c0_i32_0 : i32, i32, i32
  }
}

</mosaic_0001>

<llo_original>
// kernel: tpu_custom_call.1
$region0: #{tpu_custom_call.1}
  #allocation0 [shape = 'u32[]', space=smem, size = 0x4, offset = 0x4, fixed_abs, tag = 'smem constant byte address 0x4 - core index']
  #allocation1 [shape = 'u32[144,128]{1,0:T(1,128)}', space=vmem, size = 0x12000, scoped, tag = 'internal scratch']
  %s0 = inlined_call_operand.hbm [shape: f32[2,8,32], index: 0, kind: input, shape index: {}]
  %s1 = inlined_call_operand.hbm [shape: bf16[32,96], index: 1, kind: input, shape index: {}]
  %s2 = inlined_call_operand.vmem [shape: f32[1,96], index: 2, kind: input, shape index: {}]
  %s3 = inlined_call_operand.hbm [shape: f32[2,8,32], index: 3, kind: output, shape index: {}]
  %s4 = sld [smem:[#allocation0]]
  $region30: #{tpu_custom_call.1} parent=0
    _
  %s6 = ssub.s32 1, %s4
  %s7 = scalar_select 0, %s6, %s4
  $region1: #{tpu_custom_call.1} parent=0
    #allocation2 [shape = 'u8[8192]{0}', space=vmem, size = 0x2000, scoped, tag = 'input window, operand 0, single buffered']
    #allocation3 [shape = 's32[1]{0}', space=sflag, size = 0x4, scoped, tag = 'scoped memory for tpu_custom_call.1']
    #allocation4 [shape = 's32[1]{0}', space=sflag, size = 0x4, scoped, tag = 'scoped memory for tpu_custom_call.1']
    #allocation5 [shape = 'u8[8192]{0}', space=vmem, size = 0x2000, scoped, tag = 'input window, operand 1, single buffered']
    #allocation6 [shape = 's32[1]{0}', space=sflag, size = 0x4, scoped, tag = 'scoped memory for tpu_custom_call.1']
    #allocation7 [shape = 'u8[8192]{0}', space=vmem, size = 0x2000, scoped, tag = 'output window, operand 0, single buffered']
    %8 = vsyncpa [#allocation3], 0
    %9 = vsyncpa [#allocation6], 0
    %10 = vsyncpa [#allocation4], 0
    // Predicated region
    $region2: #{tpu_custom_call.1} parent=1 // pred_check
      _
    $region3: #{tpu_custom_call.1} parent=1 // pred_check_branch
      %12 = sbr.rel (0) target = $region5
    $region4: #{tpu_custom_call.1} parent=1 // pred_region
      %s14 = ssub.s32 256, 256
      %15 = vsyncadd [#allocation3], %s14
      %s16 = sshll.u32 [#allocation2], 4
      %s17 = int_to_ptr.vmem [resolvable:$true] %s16
      %22 = dma.hbm_to_vmem [thread:$0]  %s0, 256, %s17, [#allocation3], 128, 128, 8
    $region5: #{tpu_custom_call.1} parent=1 // pred_fallthru
      _
    // Predicated region
    $region6: #{tpu_custom_call.1} parent=1 // pred_check
      _
    $region7: #{tpu_custom_call.1} parent=1 // pred_check_branch
      %24 = sbr.rel (0) target = $region9
    $region8: #{tpu_custom_call.1} parent=1 // pred_region
      %s26 = ssub.s32 256, 256
      %27 = vsyncadd [#allocation6], %s26
      %s28 = sshll.u32 [#allocation5], 4
      %s29 = int_to_ptr.vmem [resolvable:$true] %s28
      %34 = dma.hbm_to_vmem [thread:$0]  %s1, 256, %s29, [#allocation6], 64, 64, 4
    $region9: #{tpu_custom_call.1} parent=1 // pred_fallthru
      _
    // Predicated region
    $region10: #{tpu_custom_call.1} parent=1 // pred_check
      _
    $region11: #{tpu_custom_call.1} parent=1 // pred_check_branch
      %36 = sbr.rel (0) target = $region13
    $region12: #{tpu_custom_call.1} parent=1 // pred_region
      _
    $region13: #{tpu_custom_call.1} parent=1 // pred_fallthru
      _
    // Predicated region
    $region14: #{tpu_custom_call.1} parent=1 // pred_check
      _
    $region15: #{tpu_custom_call.1} parent=1 // pred_check_branch
      %38 = sbr.rel (0) target = $region17
    $region16: #{tpu_custom_call.1} parent=1 // pred_region
      %39 = dma.done [#allocation3], 256
    $region17: #{tpu_custom_call.1} parent=1 // pred_fallthru
      _
    // Predicated region
    $region18: #{tpu_custom_call.1} parent=1 // pred_check
      _
    $region19: #{tpu_custom_call.1} parent=1 // pred_check_branch
      %41 = sbr.rel (0) target = $region21
    $region20: #{tpu_custom_call.1} parent=1 // pred_region
      %42 = dma.done [#allocation6], 256
    $region21: #{tpu_custom_call.1} parent=1 // pred_fallthru
      _
    %v44 = vld [vmem:[#allocation2] sm:$0xff]
    %v45 = vld [vmem:[#allocation2 + $0x8] sm:$0xff]
    %v46 = vpack.c.bf16 %v45, %v44
    %v47 = vld [vmem:[#allocation5] sm:$0xf]
    %v48 = vld [vmem:[#allocation5 + $0x4] sm:$0xf]
    %v49 = vld [vmem:[#allocation5 + $0x8] sm:$0xf]
    %v50 = vld [vmem:[#allocation5 + $0xc] sm:$0xf]
    %v51 = vld [vmem:[%s2] sm:$0x1]
    %v53 = vlaneseq
    %v54 = vshrl.u32 %v53, 7
    %v55 = vsub.s32 0, %v54
    %v56 = vrot.slane %v51, %v55
    %v62 = vunpack.c.l.b16 %v47
    %v63 = vunpack.c.l.b16 %v48
    %v64 = vunpack.c.l.b16 %v49
    %v65 = vunpack.c.l.b16 %v50
    %v66 = vpack.c.b16 %v63, %v62
    %v67 = vpack.c.b16 %v65, %v64
    %vm70 = vcmask 261120
    %v72 = vsel %vm70, %v46, 0
    %74 = vmatprep.subr.bf16.mxu0 0
    %75 = vmatpush1.bf16.msra.mxu0 0
    %76 = vmatprep.subr.bf16.mxu0 0
    %77 = vmatpush1.bf16.msra.mxu0 0
    %78 = vmatprep.subr.bf16.mxu0 0
    %79 = vmatpush1.bf16.msra.mxu0 0
    %80 = vmatprep.subr.bf16.mxu0 0
    %81 = vmatpush1.bf16.msra.mxu0 0
    %82 = vmatprep.subr.bf16.mxu0 0
    %83 = vmatpush1.bf16.msra.mxu0 0
    %84 = vmatprep.subr.bf16.mxu0 0
    %85 = vmatpush1.bf16.msra.mxu0 0
    %86 = vmatprep.subr.bf16.mxu0 0
    %87 = vmatpush1.bf16.msra.mxu0 %v67
    %88 = vmatprep.subr.bf16.mxu0 0
    %89 = vmatpush1.bf16.msra.mxu0 %v66
    %90 = vmatprep.subr.bf16.mxu0 0
    %91 = vmatpush2.bf16.msra.mxu0 0
    %92 = vmatprep.subr.bf16.mxu0 0
    %93 = vmatpush2.bf16.msra.mxu0 0
    %94 = vmatprep.subr.bf16.mxu0 0
    %95 = vmatpush2.bf16.msra.mxu0 0
    %96 = vmatprep.subr.bf16.mxu0 0
    %97 = vmatpush2.bf16.msra.mxu0 0
    %98 = vmatprep.subr.bf16.mxu0 0
    %99 = vmatpush2.bf16.msra.mxu0 0
    %100 = vmatprep.subr.bf16.mxu0 0
    %101 = vmatpush2.bf16.msra.mxu0 0
    %102 = vmatprep.subr.bf16.mxu0 0
    %103 = vmatpush2.bf16.msra.mxu0 0
    %104 = vmatprep.subr.bf16.mxu0 0
    %105 = vmatpush2.bf16.msra.mxu0 0
    %106 = vmatprep.mubr.bf16.mxu0 0
    %107 = vmatmul.mubr.bf16.gmra.mxu0 %v72
    %v108 = vpop.f32.mrf.mxu0
    %v109 = vadd.f32 %v56, %v108
    %v110 = vpop.f32.mrf.mxu0
    %v111 = vpop.f32.mrf.mxu0
    %v112 = vadd.f32 %v56, %v111
    %v113 = vpop.f32.mrf.mxu0
    %114 = vdwg.mxu0
    %v115 = vmul.f32 %v109, 0.0625
    %v116 = vmul.f32 %v112, 0.0625
    %v117 = vpack.c.bf16 %v116, %v115
    %v118 = vpack.c.bf16 %v112, %v109
    %120 = vrot.lane.b32.xlu0 %v118, 96
    %v121 = vpop.permute.xlu0 %120
    %vm122 = vcmask 130048
    %v124 = vsel %vm122, %v117, 0
    %v127 = vsel %vm122, %v121, 0
    %129 = vmatprep.subr.bf16.mxu0 0
    %130 = vmatpush1.bf16.xpose.msra.mxu0 0
    %131 = vmatprep.subr.bf16.mxu0 0
    %132 = vmatpush1.bf16.xpose.msra.mxu0 0
    %133 = vmatprep.subr.bf16.mxu0 0
    %134 = vmatpush1.bf16.xpose.msra.mxu0 0
    %135 = vmatprep.subr.bf16.mxu0 0
    %136 = vmatpush1.bf16.xpose.msra.mxu0 0
    %137 = vmatprep.subr.bf16.mxu0 0
    %138 = vmatpush1.bf16.xpose.msra.mxu0 0
    %139 = vmatprep.subr.bf16.mxu0 0
    %140 = vmatpush1.bf16.xpose.msra.mxu0 0
    %141 = vmatprep.subr.bf16.mxu0 0
    %142 = vmatpush1.bf16.xpose.msra.mxu0 0
    %143 = vmatprep.subr.bf16.mxu0 0
    %144 = vmatpush1.bf16.xpose.msra.mxu0 %v127
    %145 = vmatprep.subr.bf16.mxu0 0
    %146 = vmatpush2.bf16.xpose.msra.mxu0 0
    %147 = vmatprep.subr.bf16.mxu0 0
    %148 = vmatpush2.bf16.xpose.msra.mxu0 0
    %149 = vmatprep.subr.bf16.mxu0 0
    %150 = vmatpush2.bf16.xpose.msra.mxu0 0
    %151 = vmatprep.subr.bf16.mxu0 0
    %152 = vmatpush2.bf16.xpose.msra.mxu0 0
    %153 = vmatprep.subr.bf16.mxu0 0
    %154 = vmatpush2.bf16.xpose.msra.mxu0 0
    %155 = vmatprep.subr.bf16.mxu0 0
    %156 = vmatpush2.bf16.xpose.msra.mxu0 0
    %157 = vmatprep.subr.bf16.mxu0 0
    %158 = vmatpush2.bf16.xpose.msra.mxu0 0
    %159 = vmatprep.subr.bf16.mxu0 0
    %160 = vmatpush2.bf16.xpose.msra.mxu0 0
    %161 = vmatprep.mubr.bf16.mxu0 0
    %162 = vmatmul.mubr.bf16.gmra.mxu0 %v124
    %v163 = vpop.f32.mrf.mxu0
    %v164 = vadd.f32 0.0, %v163
    %v165 = vpop.f32.mrf.mxu0
    %v166 = vpop.f32.mrf.mxu0
    %v167 = vpop.f32.mrf.mxu0
    %168 = vdwg.mxu0
    %vm169 = vcmask 64512
    %v170 = vsel %vm169, %v164, -inf
    %171 = vmax.xlane.f32.xlu0 %v170
    %v172 = vpop.xlane.xlu0 %171
    %v173 = vsub.f32 %v164, %v172
    %v174 = vmul.f32 %v173, 1.442695
    %v175 = vpow.pop %v174
    %v176 = vsel %vm169, %v175, 0.0
    %177 = vadd.xlane.f32.xlu0 %v176
    %v178 = vpop.xlane.xlu0 %177
    %v179 = vrcp.pop %v178
    %v180 = vmul.f32 %v175, %v179
    %v181 = vpack.c.bf16 %v180, %v180
    %182 = vrot.lane.b32.xlu0 %v118, 64
    %v183 = vpop.permute.xlu0 %182
    %v185 = vsel %vm169, %v181, 0
    %vm187 = vcmask 1043456
    %v189 = vsel %vm187, %v183, 0
    %191 = vmatprep.subr.bf16.mxu0 0
    %192 = vmatpush1.bf16.msra.mxu0 0
    %193 = vmatprep.subr.bf16.mxu0 0
    %194 = vmatpush1.bf16.msra.mxu0 0
    %195 = vmatprep.subr.bf16.mxu0 0
    %196 = vmatpush1.bf16.msra.mxu0 0
    %197 = vmatprep.subr.bf16.mxu0 0
    %198 = vmatpush1.bf16.msra.mxu0 0
    %199 = vmatprep.subr.bf16.mxu0 0
    %200 = vmatpush1.bf16.msra.mxu0 0
    %201 = vmatprep.subr.bf16.mxu0 0
    %202 = vmatpush1.bf16.msra.mxu0 0
    %203 = vmatprep.subr.bf16.mxu0 0
    %204 = vmatpush1.bf16.msra.mxu0 0
    %205 = vmatprep.subr.bf16.mxu0 0
    %206 = vmatpush1.bf16.msra.mxu0 %v189
    %207 = vmatprep.subr.bf16.mxu0 0
    %208 = vmatpush2.bf16.msra.mxu0 0
    %209 = vmatprep.subr.bf16.mxu0 0
    %210 = vmatpush2.bf16.msra.mxu0 0
    %211 = vmatprep.subr.bf16.mxu0 0
    %212 = vmatpush2.bf16.msra.mxu0 0
    %213 = vmatprep.subr.bf16.mxu0 0
    %214 = vmatpush2.bf16.msra.mxu0 0
    %215 = vmatprep.subr.bf16.mxu0 0
    %216 = vmatpush2.bf16.msra.mxu0 0
    %217 = vmatprep.subr.bf16.mxu0 0
    %218 = vmatpush2.bf16.msra.mxu0 0
    %219 = vmatprep.subr.bf16.mxu0 0
    %220 = vmatpush2.bf16.msra.mxu0 0
    %221 = vmatprep.subr.bf16.mxu0 0
    %222 = vmatpush2.bf16.msra.mxu0 0
    %223 = vmatprep.mubr.bf16.mxu0 0
    %224 = vmatmul.mubr.bf16.gmra.mxu0 %v185
    %v225 = vpop.f32.mrf.mxu0
    %v226 = vadd.f32 0.0, %v225
    %v227 = vpop.f32.mrf.mxu0
    %v228 = vpop.f32.mrf.mxu0
    %v229 = vpop.f32.mrf.mxu0
    %230 = vdwg.mxu0
    %232 = vrot.lane.b32.xlu0 %v117, 112
    %v233 = vpop.permute.xlu0 %232
    %234 = vrot.lane.b32.xlu0 %v118, 80
    %v235 = vpop.permute.xlu0 %234
    %v237 = vsel %vm122, %v233, 0
    %v240 = vsel %vm122, %v235, 0
    %242 = vmatprep.subr.bf16.mxu0 0
    %243 = vmatpush1.bf16.xpose.msra.mxu0 0
    %244 = vmatprep.subr.bf16.mxu0 0
    %245 = vmatpush1.bf16.xpose.msra.mxu0 0
    %246 = vmatprep.subr.bf16.mxu0 0
    %247 = vmatpush1.bf16.xpose.msra.mxu0 0
    %248 = vmatprep.subr.bf16.mxu0 0
    %249 = vmatpush1.bf16.xpose.msra.mxu0 0
    %250 = vmatprep.subr.bf16.mxu0 0
    %251 = vmatpush1.bf16.xpose.msra.mxu0 0
    %252 = vmatprep.subr.bf16.mxu0 0
    %253 = vmatpush1.bf16.xpose.msra.mxu0 0
    %254 = vmatprep.subr.bf16.mxu0 0
    %255 = vmatpush1.bf16.xpose.msra.mxu0 0
    %256 = vmatprep.subr.bf16.mxu0 0
    %257 = vmatpush1.bf16.xpose.msra.mxu0 %v240
    %258 = vmatprep.subr.bf16.mxu0 0
    %259 = vmatpush2.bf16.xpose.msra.mxu0 0
    %260 = vmatprep.subr.bf16.mxu0 0
    %261 = vmatpush2.bf16.xpose.msra.mxu0 0
    %262 = vmatprep.subr.bf16.mxu0 0
    %263 = vmatpush2.bf16.xpose.msra.mxu0 0
    %264 = vmatprep.subr.bf16.mxu0 0
    %265 = vmatpush2.bf16.xpose.msra.mxu0 0
    %266 = vmatprep.subr.bf16.mxu0 0
    %267 = vmatpush2.bf16.xpose.msra.mxu0 0
    %268 = vmatprep.subr.bf16.mxu0 0
    %269 = vmatpush2.bf16.xpose.msra.mxu0 0
    %270 = vmatprep.subr.bf16.mxu0 0
    %271 = vmatpush2.bf16.xpose.msra.mxu0 0
    %272 = vmatprep.subr.bf16.mxu0 0
    %273 = vmatpush2.bf16.xpose.msra.mxu0 0
    %274 = vmatprep.mubr.bf16.mxu0 0
    %275 = vmatmul.mubr.bf16.gmra.mxu0 %v237
    %v276 = vpop.f32.mrf.mxu0
    %v277 = vadd.f32 0.0, %v276
    %v278 = vpop.f32.mrf.mxu0
    %v279 = vpop.f32.mrf.mxu0
    %v280 = vpop.f32.mrf.mxu0
    %281 = vdwg.mxu0
    %v282 = vsel %vm169, %v277, -inf
    %283 = vmax.xlane.f32.xlu0 %v282
    %v284 = vpop.xlane.xlu0 %283
    %v285 = vsub.f32 %v277, %v284
    %v286 = vmul.f32 %v285, 1.442695
    %v287 = vpow.pop %v286
    %v288 = vsel %vm169, %v287, 0.0
    %289 = vadd.xlane.f32.xlu0 %v288
    %v290 = vpop.xlane.xlu0 %289
    %v291 = vrcp.pop %v290
    %v292 = vmul.f32 %v287, %v291
    %v293 = vpack.c.bf16 %v292, %v292
    %294 = vrot.lane.b32.xlu0 %v118, 48
    %v295 = vpop.permute.xlu0 %294
    %v297 = vsel %vm169, %v293, 0
    %v300 = vsel %vm187, %v295, 0
    %302 = vmatprep.subr.bf16.mxu0 0
    %303 = vmatpush1.bf16.msra.mxu0 0
    %304 = vmatprep.subr.bf16.mxu0 0
    %305 = vmatpush1.bf16.msra.mxu0 0
    %306 = vmatprep.subr.bf16.mxu0 0
    %307 = vmatpush1.bf16.msra.mxu0 0
    %308 = vmatprep.subr.bf16.mxu0 0
    %309 = vmatpush1.bf16.msra.mxu0 0
    %310 = vmatprep.subr.bf16.mxu0 0
    %311 = vmatpush1.bf16.msra.mxu0 0
    %312 = vmatprep.subr.bf16.mxu0 0
    %313 = vmatpush1.bf16.msra.mxu0 0
    %314 = vmatprep.subr.bf16.mxu0 0
    %315 = vmatpush1.bf16.msra.mxu0 0
    %316 = vmatprep.subr.bf16.mxu0 0
    %317 = vmatpush1.bf16.msra.mxu0 %v300
    %318 = vmatprep.subr.bf16.mxu0 0
    %319 = vmatpush2.bf16.msra.mxu0 0
    %320 = vmatprep.subr.bf16.mxu0 0
    %321 = vmatpush2.bf16.msra.mxu0 0
    %322 = vmatprep.subr.bf16.mxu0 0
    %323 = vmatpush2.bf16.msra.mxu0 0
    %324 = vmatprep.subr.bf16.mxu0 0
    %325 = vmatpush2.bf16.msra.mxu0 0
    %326 = vmatprep.subr.bf16.mxu0 0
    %327 = vmatpush2.bf16.msra.mxu0 0
    %328 = vmatprep.subr.bf16.mxu0 0
    %329 = vmatpush2.bf16.msra.mxu0 0
    %330 = vmatprep.subr.bf16.mxu0 0
    %331 = vmatpush2.bf16.msra.mxu0 0
    %332 = vmatprep.subr.bf16.mxu0 0
    %333 = vmatpush2.bf16.msra.mxu0 0
    %334 = vmatprep.mubr.bf16.mxu0 0
    %335 = vmatmul.mubr.bf16.gmra.mxu0 %v297
    %v336 = vpop.f32.mrf.mxu0
    %v337 = vadd.f32 0.0, %v336
    %v338 = vpop.f32.mrf.mxu0
    %v339 = vpop.f32.mrf.mxu0
    %v340 = vpop.f32.mrf.mxu0
    %341 = vdwg.mxu0
    %343 = vrot.lane.b32.xlu0 %v337, 16
    %v344 = vpop.permute.xlu0 %343
    %v346 = vsel %vm122, %v226, %v344
    %347 = vst.msk [vmem:[#allocation7] sm:$0xff] %vm70, %v346
    %v348 = vrot.slane %v117, 4
    %v349 = vrot.slane %v118, 4
    %350 = vrot.lane.b32.xlu0 %v349, 96
    %v351 = vpop.permute.xlu0 %350
    %v353 = vsel %vm122, %v348, 0
    %v356 = vsel %vm122, %v351, 0
    %358 = vmatprep.subr.bf16.mxu0 0
    %359 = vmatpush1.bf16.xpose.msra.mxu0 0
    %360 = vmatprep.subr.bf16.mxu0 0
    %361 = vmatpush1.bf16.xpose.msra.mxu0 0
    %362 = vmatprep.subr.bf16.mxu0 0
    %363 = vmatpush1.bf16.xpose.msra.mxu0 0
    %364 = vmatprep.subr.bf16.mxu0 0
    %365 = vmatpush1.bf16.xpose.msra.mxu0 0
    %366 = vmatprep.subr.bf16.mxu0 0
    %367 = vmatpush1.bf16.xpose.msra.mxu0 0
    %368 = vmatprep.subr.bf16.mxu0 0
    %369 = vmatpush1.bf16.xpose.msra.mxu0 0
    %370 = vmatprep.subr.bf16.mxu0 0
    %371 = vmatpush1.bf16.xpose.msra.mxu0 0
    %372 = vmatprep.subr.bf16.mxu0 0
    %373 = vmatpush1.bf16.xpose.msra.mxu0 %v356
    %374 = vmatprep.subr.bf16.mxu0 0
    %375 = vmatpush2.bf16.xpose.msra.mxu0 0
    %376 = vmatprep.subr.bf16.mxu0 0
    %377 = vmatpush2.bf16.xpose.msra.mxu0 0
    %378 = vmatprep.subr.bf16.mxu0 0
    %379 = vmatpush2.bf16.xpose.msra.mxu0 0
    %380 = vmatprep.subr.bf16.mxu0 0
    %381 = vmatpush2.bf16.xpose.msra.mxu0 0
    %382 = vmatprep.subr.bf16.mxu0 0
    %383 = vmatpush2.bf16.xpose.msra.mxu0 0
    %384 = vmatprep.subr.bf16.mxu0 0
    %385 = vmatpush2.bf16.xpose.msra.mxu0 0
    %386 = vmatprep.subr.bf16.mxu0 0
    %387 = vmatpush2.bf16.xpose.msra.mxu0 0
    %388 = vmatprep.subr.bf16.mxu0 0
    %389 = vmatpush2.bf16.xpose.msra.mxu0 0
    %390 = vmatprep.mubr.bf16.mxu0 0
    %391 = vmatmul.mubr.bf16.gmra.mxu0 %v353
    %v392 = vpop.f32.mrf.mxu0
    %v393 = vadd.f32 0.0, %v392
    %v394 = vpop.f32.mrf.mxu0
    %v395 = vpop.f32.mrf.mxu0
    %v396 = vpop.f32.mrf.mxu0
    %397 = vdwg.mxu0
    %v398 = vsel %vm169, %v393, -inf
    %399 = vmax.xlane.f32.xlu0 %v398
    %v400 = vpop.xlane.xlu0 %399
    %v401 = vsub.f32 %v393, %v400
    %v402 = vmul.f32 %v401, 1.442695
    %v403 = vpow.pop %v402
    %v404 = vsel %vm169, %v403, 0.0
    %405 = vadd.xlane.f32.xlu0 %v404
    %v406 = vpop.xlane.xlu0 %405
    %v407 = vrcp.pop %v406
    %v408 = vmul.f32 %v403, %v407
    %v409 = vpack.c.bf16 %v408, %v408
    %410 = vrot.lane.b32.xlu0 %v349, 64
    %v411 = vpop.permute.xlu0 %410
    %v413 = vsel %vm169, %v409, 0
    %v416 = vsel %vm187, %v411, 0
    %418 = vmatprep.subr.bf16.mxu0 0
    %419 = vmatpush1.bf16.msra.mxu0 0
    %420 = vmatprep.subr.bf16.mxu0 0
    %421 = vmatpush1.bf16.msra.mxu0 0
    %422 = vmatprep.subr.bf16.mxu0 0
    %423 = vmatpush1.bf16.msra.mxu0 0
    %424 = vmatprep.subr.bf16.mxu0 0
    %425 = vmatpush1.bf16.msra.mxu0 0
    %426 = vmatprep.subr.bf16.mxu0 0
    %427 = vmatpush1.bf16.msra.mxu0 0
    %428 = vmatprep.subr.bf16.mxu0 0
    %429 = vmatpush1.bf16.msra.mxu0 0
    %430 = vmatprep.subr.bf16.mxu0 0
    %431 = vmatpush1.bf16.msra.mxu0 0
    %432 = vmatprep.subr.bf16.mxu0 0
    %433 = vmatpush1.bf16.msra.mxu0 %v416
    %434 = vmatprep.subr.bf16.mxu0 0
    %435 = vmatpush2.bf16.msra.mxu0 0
    %436 = vmatprep.subr.bf16.mxu0 0
    %437 = vmatpush2.bf16.msra.mxu0 0
    %438 = vmatprep.subr.bf16.mxu0 0
    %439 = vmatpush2.bf16.msra.mxu0 0
    %440 = vmatprep.subr.bf16.mxu0 0
    %441 = vmatpush2.bf16.msra.mxu0 0
    %442 = vmatprep.subr.bf16.mxu0 0
    %443 = vmatpush2.bf16.msra.mxu0 0
    %444 = vmatprep.subr.bf16.mxu0 0
    %445 = vmatpush2.bf16.msra.mxu0 0
    %446 = vmatprep.subr.bf16.mxu0 0
    %447 = vmatpush2.bf16.msra.mxu0 0
    %448 = vmatprep.subr.bf16.mxu0 0
    %449 = vmatpush2.bf16.msra.mxu0 0
    %450 = vmatprep.mubr.bf16.mxu0 0
    %451 = vmatmul.mubr.bf16.gmra.mxu0 %v413
    %v452 = vpop.f32.mrf.mxu0
    %v453 = vadd.f32 0.0, %v452
    %v454 = vpop.f32.mrf.mxu0
    %v455 = vpop.f32.mrf.mxu0
    %v456 = vpop.f32.mrf.mxu0
    %457 = vdwg.mxu0
    %458 = vrot.lane.b32.xlu0 %v348, 112
    %v459 = vpop.permute.xlu0 %458
    %460 = vrot.lane.b32.xlu0 %v349, 80
    %v461 = vpop.permute.xlu0 %460
    %v463 = vsel %vm122, %v459, 0
    %v466 = vsel %vm122, %v461, 0
    %468 = vmatprep.subr.bf16.mxu0 0
    %469 = vmatpush1.bf16.xpose.msra.mxu0 0
    %470 = vmatprep.subr.bf16.mxu0 0
    %471 = vmatpush1.bf16.xpose.msra.mxu0 0
    %472 = vmatprep.subr.bf16.mxu0 0
    %473 = vmatpush1.bf16.xpose.msra.mxu0 0
    %474 = vmatprep.subr.bf16.mxu0 0
    %475 = vmatpush1.bf16.xpose.msra.mxu0 0
    %476 = vmatprep.subr.bf16.mxu0 0
    %477 = vmatpush1.bf16.xpose.msra.mxu0 0
    %478 = vmatprep.subr.bf16.mxu0 0
    %479 = vmatpush1.bf16.xpose.msra.mxu0 0
    %480 = vmatprep.subr.bf16.mxu0 0
    %481 = vmatpush1.bf16.xpose.msra.mxu0 0
    %482 = vmatprep.subr.bf16.mxu0 0
    %483 = vmatpush1.bf16.xpose.msra.mxu0 %v466
    %484 = vmatprep.subr.bf16.mxu0 0
    %485 = vmatpush2.bf16.xpose.msra.mxu0 0
    %486 = vmatprep.subr.bf16.mxu0 0
    %487 = vmatpush2.bf16.xpose.msra.mxu0 0
    %488 = vmatprep.subr.bf16.mxu0 0
    %489 = vmatpush2.bf16.xpose.msra.mxu0 0
    %490 = vmatprep.subr.bf16.mxu0 0
    %491 = vmatpush2.bf16.xpose.msra.mxu0 0
    %492 = vmatprep.subr.bf16.mxu0 0
    %493 = vmatpush2.bf16.xpose.msra.mxu0 0
    %494 = vmatprep.subr.bf16.mxu0 0
    %495 = vmatpush2.bf16.xpose.msra.mxu0 0
    %496 = vmatprep.subr.bf16.mxu0 0
    %497 = vmatpush2.bf16.xpose.msra.mxu0 0
    %498 = vmatprep.subr.bf16.mxu0 0
    %499 = vmatpush2.bf16.xpose.msra.mxu0 0
    %500 = vmatprep.mubr.bf16.mxu0 0
    %501 = vmatmul.mubr.bf16.gmra.mxu0 %v463
    %v502 = vpop.f32.mrf.mxu0
    %v503 = vadd.f32 0.0, %v502
    %v504 = vpop.f32.mrf.mxu0
    %v505 = vpop.f32.mrf.mxu0
    %v506 = vpop.f32.mrf.mxu0
    %507 = vdwg.mxu0
    %v508 = vsel %vm169, %v503, -inf
    %509 = vmax.xlane.f32.xlu0 %v508
    %v510 = vpop.xlane.xlu0 %509
    %v511 = vsub.f32 %v503, %v510
    %v512 = vmul.f32 %v511, 1.442695
    %v513 = vpow.pop %v512
    %v514 = vsel %vm169, %v513, 0.0
    %515 = vadd.xlane.f32.xlu0 %v514
    %v516 = vpop.xlane.xlu0 %515
    %v517 = vrcp.pop %v516
    %v518 = vmul.f32 %v513, %v517
    %v519 = vpack.c.bf16 %v518, %v518
    %520 = vrot.lane.b32.xlu0 %v349, 48
    %v521 = vpop.permute.xlu0 %520
    %v523 = vsel %vm169, %v519, 0
    %v526 = vsel %vm187, %v521, 0
    %528 = vmatprep.subr.bf16.mxu0 0
    %529 = vmatpush1.bf16.msra.mxu0 0
    %530 = vmatprep.subr.bf16.mxu0 0
    %531 = vmatpush1.bf16.msra.mxu0 0
    %532 = vmatprep.subr.bf16.mxu0 0
    %533 = vmatpush1.bf16.msra.mxu0 0
    %534 = vmatprep.subr.bf16.mxu0 0
    %535 = vmatpush1.bf16.msra.mxu0 0
    %536 = vmatprep.subr.bf16.mxu0 0
    %537 = vmatpush1.bf16.msra.mxu0 0
    %538 = vmatprep.subr.bf16.mxu0 0
    %539 = vmatpush1.bf16.msra.mxu0 0
    %540 = vmatprep.subr.bf16.mxu0 0
    %541 = vmatpush1.bf16.msra.mxu0 0
    %542 = vmatprep.subr.bf16.mxu0 0
    %543 = vmatpush1.bf16.msra.mxu0 %v526
    %544 = vmatprep.subr.bf16.mxu0 0
    %545 = vmatpush2.bf16.msra.mxu0 0
    %546 = vmatprep.subr.bf16.mxu0 0
    %547 = vmatpush2.bf16.msra.mxu0 0
    %548 = vmatprep.subr.bf16.mxu0 0
    %549 = vmatpush2.bf16.msra.mxu0 0
    %550 = vmatprep.subr.bf16.mxu0 0
    %551 = vmatpush2.bf16.msra.mxu0 0
    %552 = vmatprep.subr.bf16.mxu0 0
    %553 = vmatpush2.bf16.msra.mxu0 0
    %554 = vmatprep.subr.bf16.mxu0 0
    %555 = vmatpush2.bf16.msra.mxu0 0
    %556 = vmatprep.subr.bf16.mxu0 0
    %557 = vmatpush2.bf16.msra.mxu0 0
    %558 = vmatprep.subr.bf16.mxu0 0
    %559 = vmatpush2.bf16.msra.mxu0 0
    %560 = vmatprep.mubr.bf16.mxu0 0
    %561 = vmatmul.mubr.bf16.gmra.mxu0 %v523
    %v562 = vpop.f32.mrf.mxu0
    %v563 = vadd.f32 0.0, %v562
    %v564 = vpop.f32.mrf.mxu0
    %v565 = vpop.f32.mrf.mxu0
    %v566 = vpop.f32.mrf.mxu0
    %567 = vdwg.mxu0
    %569 = vrot.lane.b32.xlu0 %v563, 16
    %v570 = vpop.permute.xlu0 %569
    %v572 = vsel %vm122, %v453, %v570
    %s573 = scalar_lea.vmem [#allocation7], 8
    %574 = vst.msk [vmem:[%s573] sm:$0xff] %vm70, %v572
    // Predicated region
    $region22: #{tpu_custom_call.1} parent=1 // pred_check
      _
    $region23: #{tpu_custom_call.1} parent=1 // pred_check_branch
      %576 = sbr.rel (0) target = $region25
    $region24: #{tpu_custom_call.1} parent=1 // pred_region
      %s578 = ssub.s32 256, 256
      %579 = vsyncadd [#allocation4], %s578
      %s580 = sshll.u32 [#allocation7], 4
      %s581 = int_to_ptr.vmem [resolvable:$true] %s580
      %586 = dma.vmem_to_hbm [thread:$0]  %s581, 256, %s3, [#allocation4], 128, 128, 8
    $region25: #{tpu_custom_call.1} parent=1 // pred_fallthru
      _
    // Predicated region
    $region26: #{tpu_custom_call.1} parent=1 // pred_check
      _
    $region27: #{tpu_custom_call.1} parent=1 // pred_check_branch
      %588 = sbr.rel (0) target = $region29
    $region28: #{tpu_custom_call.1} parent=1 // pred_region
      %589 = dma.done [#allocation4], 256
    $region29: #{tpu_custom_call.1} parent=1 // pred_fallthru
      _
    %590 = vsyncpa [#allocation3], 1
    %591 = vsyncpa [#allocation6], 1
    %592 = vsyncpa [#allocation4], 1

// kernel: tpu_custom_call.1
$region0: #{tpu_custom_call.1}
  #allocation0 [shape = 'u32[]', space=smem, size = 0x4, offset = 0x4, fixed_abs, tag = 'smem constant byte address 0x4 - core index']
  #allocation1 [shape = 'u32[144,128]{1,0:T(1,128)}', space=vmem, size = 0x12000, scoped, tag = 'internal scratch']
  %s0 = inlined_call_operand.hbm [shape: f32[2,8,32], index: 0, kind: input, shape index: {}]
  %s1 = inlined_call_operand.hbm [shape: bf16[32,96], index: 1, kind: input, shape index: {}]
  %s2 = inlined_call_operand.vmem [shape: f32[1,96], index: 2, kind: input, shape index: {}]
  %s3 = inlined_call_operand.hbm [shape: f32[2,8,32], index: 3, kind: output, shape index: {}]
  %s4 = sld [smem:[#allocation0]]
  $region30: #{tpu_custom_call.1} parent=0
    _
  %s6 = ssub.s32 1, %s4
  %s7 = scalar_select 0, %s6, %s4
  $region1: #{tpu_custom_call.1} parent=0
    #allocation2 [shape = 'u8[8192]{0}', space=vmem, size = 0x2000, scoped, tag = 'input window, operand 0, single buffered']
    #allocation3 [shape = 's32[1]{0}', space=sflag, size = 0x4, scoped, tag = 'scoped memory for tpu_custom_call.1']
    #allocation4 [shape = 's32[1]{0}', space=sflag, size = 0x4, scoped, tag = 'scoped memory for tpu_custom_call.1']
    #allocation5 [shape = 'u8[8192]{0}', space=vmem, size = 0x2000, scoped, tag = 'input window, operand 1, single buffered']
    #allocation6 [shape = 's32[1]{0}', space=sflag, size = 0x4, scoped, tag = 'scoped memory for tpu_custom_call.1']
    #allocation7 [shape = 'u8[8192]{0}', space=vmem, size = 0x2000, scoped, tag = 'output window, operand 0, single buffered']
    %8 = vsyncpa [#allocation3], 0
    %9 = vsyncpa [#allocation6], 0
    %10 = vsyncpa [#allocation4], 0
    // Predicated region
    $region2: #{tpu_custom_call.1} parent=1 // pred_check
      _
    $region3: #{tpu_custom_call.1} parent=1 // pred_check_branch
      %12 = sbr.rel (0) target = $region5
    $region4: #{tpu_custom_call.1} parent=1 // pred_region
      %s14 = ssub.s32 256, 256
      %15 = vsyncadd [#allocation3], %s14
      %s16 = sshll.u32 [#allocation2], 4
      %s17 = int_to_ptr.vmem [resolvable:$true] %s16
      %22 = dma.hbm_to_vmem [thread:$0]  %s0, 256, %s17, [#allocation3], 128, 128, 8
    $region5: #{tpu_custom_call.1} parent=1 // pred_fallthru
      _
    // Predicated region
    $region6: #{tpu_custom_call.1} parent=1 // pred_check
      _
    $region7: #{tpu_custom_call.1} parent=1 // pred_check_branch
      %24 = sbr.rel (0) target = $region9
    $region8: #{tpu_custom_call.1} parent=1 // pred_region
      %s26 = ssub.s32 256, 256
      %27 = vsyncadd [#allocation6], %s26
      %s28 = sshll.u32 [#allocation5], 4
      %s29 = int_to_ptr.vmem [resolvable:$true] %s28
      %34 = dma.hbm_to_vmem [thread:$0]  %s1, 256, %s29, [#allocation6], 64, 64, 4
    $region9: #{tpu_custom_call.1} parent=1 // pred_fallthru
      _
    // Predicated region
    $region10: #{tpu_custom_call.1} parent=1 // pred_check
      _
    $region11: #{tpu_custom_call.1} parent=1 // pred_check_branch
      %36 = sbr.rel (0) target = $region13
    $region12: #{tpu_custom_call.1} parent=1 // pred_region
      _
    $region13: #{tpu_custom_call.1} parent=1 // pred_fallthru
      _
    // Predicated region
    $region14: #{tpu_custom_call.1} parent=1 // pred_check
      _
    $region15: #{tpu_custom_call.1} parent=1 // pred_check_branch
      %38 = sbr.rel (0) target = $region17
    $region16: #{tpu_custom_call.1} parent=1 // pred_region
      %39 = dma.done [#allocation3], 256
    $region17: #{tpu_custom_call.1} parent=1 // pred_fallthru
      _
    // Predicated region
    $region18: #{tpu_custom_call.1} parent=1 // pred_check
      _
    $region19: #{tpu_custom_call.1} parent=1 // pred_check_branch
      %41 = sbr.rel (0) target = $region21
    $region20: #{tpu_custom_call.1} parent=1 // pred_region
      %42 = dma.done [#allocation6], 256
    $region21: #{tpu_custom_call.1} parent=1 // pred_fallthru
      _
    %v44 = vld [vmem:[#allocation2] sm:$0xff]
    %v45 = vld [vmem:[#allocation2 + $0x8] sm:$0xff]
    %v46 = vpack.c.bf16 %v45, %v44
    %v47 = vld [vmem:[#allocation5] sm:$0xf]
    %v48 = vld [vmem:[#allocation5 + $0x4] sm:$0xf]
    %v49 = vld [vmem:[#allocation5 + $0x8] sm:$0xf]
    %v50 = vld [vmem:[#allocation5 + $0xc] sm:$0xf]
    %v51 = vld [vmem:[%s2] sm:$0x1]
    %v53 = vlaneseq
    %v54 = vshrl.u32 %v53, 7
    %v55 = vsub.s32 0, %v54
    %v56 = vrot.slane %v51, %v55
    %v62 = vunpack.c.l.b16 %v47
    %v63 = vunpack.c.l.b16 %v48
    %v64 = vunpack.c.l.b16 %v49
    %v65 = vunpack.c.l.b16 %v50
    %v66 = vpack.c.b16 %v63, %v62
    %v67 = vpack.c.b16 %v65, %v64
    %vm70 = vcmask 261120
    %v72 = vsel %vm70, %v46, 0
    %74 = vmatprep.subr.bf16.mxu0 0
    %75 = vmatpush1.bf16.msra.mxu0 0
    %76 = vmatprep.subr.bf16.mxu0 0
    %77 = vmatpush1.bf16.msra.mxu0 0
    %78 = vmatprep.subr.bf16.mxu0 0
    %79 = vmatpush1.bf16.msra.mxu0 0
    %80 = vmatprep.subr.bf16.mxu0 0
    %81 = vmatpush1.bf16.msra.mxu0 0
    %82 = vmatprep.subr.bf16.mxu0 0
    %83 = vmatpush1.bf16.msra.mxu0 0
    %84 = vmatprep.subr.bf16.mxu0 0
    %85 = vmatpush1.bf16.msra.mxu0 0
    %86 = vmatprep.subr.bf16.mxu0 0
    %87 = vmatpush1.bf16.msra.mxu0 %v67
    %88 = vmatprep.subr.bf16.mxu0 0
    %89 = vmatpush1.bf16.msra.mxu0 %v66
    %90 = vmatprep.subr.bf16.mxu0 0
    %91 = vmatpush2.bf16.msra.mxu0 0
    %92 = vmatprep.subr.bf16.mxu0 0
    %93 = vmatpush2.bf16.msra.mxu0 0
    %94 = vmatprep.subr.bf16.mxu0 0
    %95 = vmatpush2.bf16.msra.mxu0 0
    %96 = vmatprep.subr.bf16.mxu0 0
    %97 = vmatpush2.bf16.msra.mxu0 0
    %98 = vmatprep.subr.bf16.mxu0 0
    %99 = vmatpush2.bf16.msra.mxu0 0
    %100 = vmatprep.subr.bf16.mxu0 0
    %101 = vmatpush2.bf16.msra.mxu0 0
    %102 = vmatprep.subr.bf16.mxu0 0
    %103 = vmatpush2.bf16.msra.mxu0 0
    %104 = vmatprep.subr.bf16.mxu0 0
    %105 = vmatpush2.bf16.msra.mxu0 0
    %106 = vmatprep.mubr.bf16.mxu0 0
    %107 = vmatmul.mubr.bf16.gmra.mxu0 %v72
    %v108 = vpop.f32.mrf.mxu0
    %v109 = vadd.f32 %v56, %v108
    %v110 = vpop.f32.mrf.mxu0
    %v111 = vpop.f32.mrf.mxu0
    %v112 = vadd.f32 %v56, %v111
    %v113 = vpop.f32.mrf.mxu0
    %114 = vdwg.mxu0
    %v115 = vmul.f32 %v109, 0.0625
    %v116 = vmul.f32 %v112, 0.0625
    %v117 = vpack.c.bf16 %v116, %v115
    %v118 = vpack.c.bf16 %v112, %v109
    %120 = vrot.lane.b32.xlu0 %v118, 96
    %v121 = vpop.permute.xlu0 %120
    %vm122 = vcmask 130048
    %v124 = vsel %vm122, %v117, 0
    %v127 = vsel %vm122, %v121, 0
    %129 = vmatprep.subr.bf16.mxu0 0
    %130 = vmatpush1.bf16.xpose.msra.mxu0 0
    %131 = vmatprep.subr.bf16.mxu0 0
    %132 = vmatpush1.bf16.xpose.msra.mxu0 0
    %133 = vmatprep.subr.bf16.mxu0 0
    %134 = vmatpush1.bf16.xpose.msra.mxu0 0
    %135 = vmatprep.subr.bf16.mxu0 0
    %136 = vmatpush1.bf16.xpose.msra.mxu0 0
    %137 = vmatprep.subr.bf16.mxu0 0
    %138 = vmatpush1.bf16.xpose.msra.mxu0 0
    %139 = vmatprep.subr.bf16.mxu0 0
    %140 = vmatpush1.bf16.xpose.msra.mxu0 0
    %141 = vmatprep.subr.bf16.mxu0 0
    %142 = vmatpush1.bf16.xpose.msra.mxu0 0
    %143 = vmatprep.subr.bf16.mxu0 0
    %144 = vmatpush1.bf16.xpose.msra.mxu0 %v127
    %145 = vmatprep.subr.bf16.mxu0 0
    %146 = vmatpush2.bf16.xpose.msra.mxu0 0
    %147 = vmatprep.subr.bf16.mxu0 0
    %148 = vmatpush2.bf16.xpose.msra.mxu0 0
    %149 = vmatprep.subr.bf16.mxu0 0
    %150 = vmatpush2.bf16.xpose.msra.mxu0 0
    %151 = vmatprep.subr.bf16.mxu0 0
    %152 = vmatpush2.bf16.xpose.msra.mxu0 0
    %153 = vmatprep.subr.bf16.mxu0 0
    %154 = vmatpush2.bf16.xpose.msra.mxu0 0
    %155 = vmatprep.subr.bf16.mxu0 0
    %156 = vmatpush2.bf16.xpose.msra.mxu0 0
    %157 = vmatprep.subr.bf16.mxu0 0
    %158 = vmatpush2.bf16.xpose.msra.mxu0 0
    %159 = vmatprep.subr.bf16.mxu0 0
    %160 = vmatpush2.bf16.xpose.msra.mxu0 0
    %161 = vmatprep.mubr.bf16.mxu0 0
    %162 = vmatmul.mubr.bf16.gmra.mxu0 %v124
    %v163 = vpop.f32.mrf.mxu0
    %v164 = vadd.f32 0.0, %v163
    %v165 = vpop.f32.mrf.mxu0
    %v166 = vpop.f32.mrf.mxu0
    %v167 = vpop.f32.mrf.mxu0
    %168 = vdwg.mxu0
    %vm169 = vcmask 64512
    %v170 = vsel %vm169, %v164, -inf
    %171 = vmax.xlane.f32.xlu0 %v170
    %v172 = vpop.xlane.xlu0 %171
    %v173 = vsub.f32 %v164, %v172
    %v174 = vmul.f32 %v173, 1.442695
    %v175 = vpow.pop %v174
    %v176 = vsel %vm169, %v175, 0.0
    %177 = vadd.xlane.f32.xlu0 %v176
    %v178 = vpop.xlane.xlu0 %177
    %v179 = vrcp.pop %v178
    %v180 = vmul.f32 %v175, %v179
    %v181 = vpack.c.bf16 %v180, %v180
    %182 = vrot.lane.b32.xlu0 %v118, 64
    %v183 = vpop.permute.xlu0 %182
    %v185 = vsel %vm169, %v181, 0
    %vm187 = vcmask 1043456
    %v189 = vsel %vm187, %v183, 0
    %191 = vmatprep.subr.bf16.mxu0 0
    %192 = vmatpush1.bf16.msra.mxu0 0
    %193 = vmatprep.subr.bf16.mxu0 0
    %194 = vmatpush1.bf16.msra.mxu0 0
    %195 = vmatprep.subr.bf16.mxu0 0
    %196 = vmatpush1.bf16.msra.mxu0 0
    %197 = vmatprep.subr.bf16.mxu0 0
    %198 = vmatpush1.bf16.msra.mxu0 0
    %199 = vmatprep.subr.bf16.mxu0 0
    %200 = vmatpush1.bf16.msra.mxu0 0
    %201 = vmatprep.subr.bf16.mxu0 0
    %202 = vmatpush1.bf16.msra.mxu0 0
    %203 = vmatprep.subr.bf16.mxu0 0
    %204 = vmatpush1.bf16.msra.mxu0 0
    %205 = vmatprep.subr.bf16.mxu0 0
    %206 = vmatpush1.bf16.msra.mxu0 %v189
    %207 = vmatprep.subr.bf16.mxu0 0
    %208 = vmatpush2.bf16.msra.mxu0 0
    %209 = vmatprep.subr.bf16.mxu0 0
    %210 = vmatpush2.bf16.msra.mxu0 0
    %211 = vmatprep.subr.bf16.mxu0 0
    %212 = vmatpush2.bf16.msra.mxu0 0
    %213 = vmatprep.subr.bf16.mxu0 0
    %214 = vmatpush2.bf16.msra.mxu0 0
    %215 = vmatprep.subr.bf16.mxu0 0
    %216 = vmatpush2.bf16.msra.mxu0 0
    %217 = vmatprep.subr.bf16.mxu0 0
    %218 = vmatpush2.bf16.msra.mxu0 0
    %219 = vmatprep.subr.bf16.mxu0 0
    %220 = vmatpush2.bf16.msra.mxu0 0
    %221 = vmatprep.subr.bf16.mxu0 0
    %222 = vmatpush2.bf16.msra.mxu0 0
    %223 = vmatprep.mubr.bf16.mxu0 0
    %224 = vmatmul.mubr.bf16.gmra.mxu0 %v185
    %v225 = vpop.f32.mrf.mxu0
    %v226 = vadd.f32 0.0, %v225
    %v227 = vpop.f32.mrf.mxu0
    %v228 = vpop.f32.mrf.mxu0
    %v229 = vpop.f32.mrf.mxu0
    %230 = vdwg.mxu0
    %232 = vrot.lane.b32.xlu0 %v117, 112
    %v233 = vpop.permute.xlu0 %232
    %234 = vrot.lane.b32.xlu0 %v118, 80
    %v235 = vpop.permute.xlu0 %234
    %v237 = vsel %vm122, %v233, 0
    %v240 = vsel %vm122, %v235, 0
    %242 = vmatprep.subr.bf16.mxu0 0
    %243 = vmatpush1.bf16.xpose.msra.mxu0 0
    %244 = vmatprep.subr.bf16.mxu0 0
    %245 = vmatpush1.bf16.xpose.msra.mxu0 0
    %246 = vmatprep.subr.bf16.mxu0 0
    %247 = vmatpush1.bf16.xpose.msra.mxu0 0
    %248 = vmatprep.subr.bf16.mxu0 0
    %249 = vmatpush1.bf16.xpose.msra.mxu0 0
    %250 = vmatprep.subr.bf16.mxu0 0
    %251 = vmatpush1.bf16.xpose.msra.mxu0 0
    %252 = vmatprep.subr.bf16.mxu0 0
    %253 = vmatpush1.bf16.xpose.msra.mxu0 0
    %254 = vmatprep.subr.bf16.mxu0 0
    %255 = vmatpush1.bf16.xpose.msra.mxu0 0
    %256 = vmatprep.subr.bf16.mxu0 0
    %257 = vmatpush1.bf16.xpose.msra.mxu0 %v240
    %258 = vmatprep.subr.bf16.mxu0 0
    %259 = vmatpush2.bf16.xpose.msra.mxu0 0
    %260 = vmatprep.subr.bf16.mxu0 0
    %261 = vmatpush2.bf16.xpose.msra.mxu0 0
    %262 = vmatprep.subr.bf16.mxu0 0
    %263 = vmatpush2.bf16.xpose.msra.mxu0 0
    %264 = vmatprep.subr.bf16.mxu0 0
    %265 = vmatpush2.bf16.xpose.msra.mxu0 0
    %266 = vmatprep.subr.bf16.mxu0 0
    %267 = vmatpush2.bf16.xpose.msra.mxu0 0
    %268 = vmatprep.subr.bf16.mxu0 0
    %269 = vmatpush2.bf16.xpose.msra.mxu0 0
    %270 = vmatprep.subr.bf16.mxu0 0
    %271 = vmatpush2.bf16.xpose.msra.mxu0 0
    %272 = vmatprep.subr.bf16.mxu0 0
    %273 = vmatpush2.bf16.xpose.msra.mxu0 0
    %274 = vmatprep.mubr.bf16.mxu0 0
    %275 = vmatmul.mubr.bf16.gmra.mxu0 %v237
    %v276 = vpop.f32.mrf.mxu0
    %v277 = vadd.f32 0.0, %v276
    %v278 = vpop.f32.mrf.mxu0
    %v279 = vpop.f32.mrf.mxu0
    %v280 = vpop.f32.mrf.mxu0
    %281 = vdwg.mxu0
    %v282 = vsel %vm169, %v277, -inf
    %283 = vmax.xlane.f32.xlu0 %v282
    %v284 = vpop.xlane.xlu0 %283
    %v285 = vsub.f32 %v277, %v284
    %v286 = vmul.f32 %v285, 1.442695
    %v287 = vpow.pop %v286
    %v288 = vsel %vm169, %v287, 0.0
    %289 = vadd.xlane.f32.xlu0 %v288
    %v290 = vpop.xlane.xlu0 %289
    %v291 = vrcp.pop %v290
    %v292 = vmul.f32 %v287, %v291
    %v293 = vpack.c.bf16 %v292, %v292
    %294 = vrot.lane.b32.xlu0 %v118, 48
    %v295 = vpop.permute.xlu0 %294
    %v297 = vsel %vm169, %v293, 0
    %v300 = vsel %vm187, %v295, 0
    %302 = vmatprep.subr.bf16.mxu0 0
    %303 = vmatpush1.bf16.msra.mxu0 0
    %304 = vmatprep.subr.bf16.mxu0 0
    %305 = vmatpush1.bf16.msra.mxu0 0
    %306 = vmatprep.subr.bf16.mxu0 0
    %307 = vmatpush1.bf16.msra.mxu0 0
    %308 = vmatprep.subr.bf16.mxu0 0
    %309 = vmatpush1.bf16.msra.mxu0 0
    %310 = vmatprep.subr.bf16.mxu0 0
    %311 = vmatpush1.bf16.msra.mxu0 0
    %312 = vmatprep.subr.bf16.mxu0 0
    %313 = vmatpush1.bf16.msra.mxu0 0
    %314 = vmatprep.subr.bf16.mxu0 0
    %315 = vmatpush1.bf16.msra.mxu0 0
    %316 = vmatprep.subr.bf16.mxu0 0
    %317 = vmatpush1.bf16.msra.mxu0 %v300
    %318 = vmatprep.subr.bf16.mxu0 0
    %319 = vmatpush2.bf16.msra.mxu0 0
    %320 = vmatprep.subr.bf16.mxu0 0
    %321 = vmatpush2.bf16.msra.mxu0 0
    %322 = vmatprep.subr.bf16.mxu0 0
    %323 = vmatpush2.bf16.msra.mxu0 0
    %324 = vmatprep.subr.bf16.mxu0 0
    %325 = vmatpush2.bf16.msra.mxu0 0
    %326 = vmatprep.subr.bf16.mxu0 0
    %327 = vmatpush2.bf16.msra.mxu0 0
    %328 = vmatprep.subr.bf16.mxu0 0
    %329 = vmatpush2.bf16.msra.mxu0 0
    %330 = vmatprep.subr.bf16.mxu0 0
    %331 = vmatpush2.bf16.msra.mxu0 0
    %332 = vmatprep.subr.bf16.mxu0 0
    %333 = vmatpush2.bf16.msra.mxu0 0
    %334 = vmatprep.mubr.bf16.mxu0 0
    %335 = vmatmul.mubr.bf16.gmra.mxu0 %v297
    %v336 = vpop.f32.mrf.mxu0
    %v337 = vadd.f32 0.0, %v336
    %v338 = vpop.f32.mrf.mxu0
    %v339 = vpop.f32.mrf.mxu0
    %v340 = vpop.f32.mrf.mxu0
    %341 = vdwg.mxu0
    %343 = vrot.lane.b32.xlu0 %v337, 16
    %v344 = vpop.permute.xlu0 %343
    %v346 = vsel %vm122, %v226, %v344
    %347 = vst.msk [vmem:[#allocation7] sm:$0xff] %vm70, %v346
    %v348 = vrot.slane %v117, 4
    %v349 = vrot.slane %v118, 4
    %350 = vrot.lane.b32.xlu0 %v349, 96
    %v351 = vpop.permute.xlu0 %350
    %v353 = vsel %vm122, %v348, 0
    %v356 = vsel %vm122, %v351, 0
    %358 = vmatprep.subr.bf16.mxu0 0
    %359 = vmatpush1.bf16.xpose.msra.mxu0 0
    %360 = vmatprep.subr.bf16.mxu0 0
    %361 = vmatpush1.bf16.xpose.msra.mxu0 0
    %362 = vmatprep.subr.bf16.mxu0 0
    %363 = vmatpush1.bf16.xpose.msra.mxu0 0
    %364 = vmatprep.subr.bf16.mxu0 0
    %365 = vmatpush1.bf16.xpose.msra.mxu0 0
    %366 = vmatprep.subr.bf16.mxu0 0
    %367 = vmatpush1.bf16.xpose.msra.mxu0 0
    %368 = vmatprep.subr.bf16.mxu0 0
    %369 = vmatpush1.bf16.xpose.msra.mxu0 0
    %370 = vmatprep.subr.bf16.mxu0 0
    %371 = vmatpush1.bf16.xpose.msra.mxu0 0
    %372 = vmatprep.subr.bf16.mxu0 0
    %373 = vmatpush1.bf16.xpose.msra.mxu0 %v356
    %374 = vmatprep.subr.bf16.mxu0 0
    %375 = vmatpush2.bf16.xpose.msra.mxu0 0
    %376 = vmatprep.subr.bf16.mxu0 0
    %377 = vmatpush2.bf16.xpose.msra.mxu0 0
    %378 = vmatprep.subr.bf16.mxu0 0
    %379 = vmatpush2.bf16.xpose.msra.mxu0 0
    %380 = vmatprep.subr.bf16.mxu0 0
    %381 = vmatpush2.bf16.xpose.msra.mxu0 0
    %382 = vmatprep.subr.bf16.mxu0 0
    %383 = vmatpush2.bf16.xpose.msra.mxu0 0
    %384 = vmatprep.subr.bf16.mxu0 0
    %385 = vmatpush2.bf16.xpose.msra.mxu0 0
    %386 = vmatprep.subr.bf16.mxu0 0
    %387 = vmatpush2.bf16.xpose.msra.mxu0 0
    %388 = vmatprep.subr.bf16.mxu0 0
    %389 = vmatpush2.bf16.xpose.msra.mxu0 0
    %390 = vmatprep.mubr.bf16.mxu0 0
    %391 = vmatmul.mubr.bf16.gmra.mxu0 %v353
    %v392 = vpop.f32.mrf.mxu0
    %v393 = vadd.f32 0.0, %v392
    %v394 = vpop.f32.mrf.mxu0
    %v395 = vpop.f32.mrf.mxu0
    %v396 = vpop.f32.mrf.mxu0
    %397 = vdwg.mxu0
    %v398 = vsel %vm169, %v393, -inf
    %399 = vmax.xlane.f32.xlu0 %v398
    %v400 = vpop.xlane.xlu0 %399
    %v401 = vsub.f32 %v393, %v400
    %v402 = vmul.f32 %v401, 1.442695
    %v403 = vpow.pop %v402
    %v404 = vsel %vm169, %v403, 0.0
    %405 = vadd.xlane.f32.xlu0 %v404
    %v406 = vpop.xlane.xlu0 %405
    %v407 = vrcp.pop %v406
    %v408 = vmul.f32 %v403, %v407
    %v409 = vpack.c.bf16 %v408, %v408
    %410 = vrot.lane.b32.xlu0 %v349, 64
    %v411 = vpop.permute.xlu0 %410
    %v413 = vsel %vm169, %v409, 0
    %v416 = vsel %vm187, %v411, 0
    %418 = vmatprep.subr.bf16.mxu0 0
    %419 = vmatpush1.bf16.msra.mxu0 0
    %420 = vmatprep.subr.bf16.mxu0 0
    %421 = vmatpush1.bf16.msra.mxu0 0
    %422 = vmatprep.subr.bf16.mxu0 0
    %423 = vmatpush1.bf16.msra.mxu0 0
    %424 = vmatprep.subr.bf16.mxu0 0
    %425 = vmatpush1.bf16.msra.mxu0 0
    %426 = vmatprep.subr.bf16.mxu0 0
    %427 = vmatpush1.bf16.msra.mxu0 0
    %428 = vmatprep.subr.bf16.mxu0 0
    %429 = vmatpush1.bf16.msra.mxu0 0
    %430 = vmatprep.subr.bf16.mxu0 0
    %431 = vmatpush1.bf16.msra.mxu0 0
    %432 = vmatprep.subr.bf16.mxu0 0
    %433 = vmatpush1.bf16.msra.mxu0 %v416
    %434 = vmatprep.subr.bf16.mxu0 0
    %435 = vmatpush2.bf16.msra.mxu0 0
    %436 = vmatprep.subr.bf16.mxu0 0
    %437 = vmatpush2.bf16.msra.mxu0 0
    %438 = vmatprep.subr.bf16.mxu0 0
    %439 = vmatpush2.bf16.msra.mxu0 0
    %440 = vmatprep.subr.bf16.mxu0 0
    %441 = vmatpush2.bf16.msra.mxu0 0
    %442 = vmatprep.subr.bf16.mxu0 0
    %443 = vmatpush2.bf16.msra.mxu0 0
    %444 = vmatprep.subr.bf16.mxu0 0
    %445 = vmatpush2.bf16.msra.mxu0 0
    %446 = vmatprep.subr.bf16.mxu0 0
    %447 = vmatpush2.bf16.msra.mxu0 0
    %448 = vmatprep.subr.bf16.mxu0 0
    %449 = vmatpush2.bf16.msra.mxu0 0
    %450 = vmatprep.mubr.bf16.mxu0 0
    %451 = vmatmul.mubr.bf16.gmra.mxu0 %v413
    %v452 = vpop.f32.mrf.mxu0
    %v453 = vadd.f32 0.0, %v452
    %v454 = vpop.f32.mrf.mxu0
    %v455 = vpop.f32.mrf.mxu0
    %v456 = vpop.f32.mrf.mxu0
    %457 = vdwg.mxu0
    %458 = vrot.lane.b32.xlu0 %v348, 112
    %v459 = vpop.permute.xlu0 %458
    %460 = vrot.lane.b32.xlu0 %v349, 80
    %v461 = vpop.permute.xlu0 %460
    %v463 = vsel %vm122, %v459, 0
    %v466 = vsel %vm122, %v461, 0
    %468 = vmatprep.subr.bf16.mxu0 0
    %469 = vmatpush1.bf16.xpose.msra.mxu0 0
    %470 = vmatprep.subr.bf16.mxu0 0
    %471 = vmatpush1.bf16.xpose.msra.mxu0 0
    %472 = vmatprep.subr.bf16.mxu0 0
    %473 = vmatpush1.bf16.xpose.msra.mxu0 0
    %474 = vmatprep.subr.bf16.mxu0 0
    %475 = vmatpush1.bf16.xpose.msra.mxu0 0
    %476 = vmatprep.subr.bf16.mxu0 0
    %477 = vmatpush1.bf16.xpose.msra.mxu0 0
    %478 = vmatprep.subr.bf16.mxu0 0
    %479 = vmatpush1.bf16.xpose.msra.mxu0 0
    %480 = vmatprep.subr.bf16.mxu0 0
    %481 = vmatpush1.bf16.xpose.msra.mxu0 0
    %482 = vmatprep.subr.bf16.mxu0 0
    %483 = vmatpush1.bf16.xpose.msra.mxu0 %v466
    %484 = vmatprep.subr.bf16.mxu0 0
    %485 = vmatpush2.bf16.xpose.msra.mxu0 0
    %486 = vmatprep.subr.bf16.mxu0 0
    %487 = vmatpush2.bf16.xpose.msra.mxu0 0
    %488 = vmatprep.subr.bf16.mxu0 0
    %489 = vmatpush2.bf16.xpose.msra.mxu0 0
    %490 = vmatprep.subr.bf16.mxu0 0
    %491 = vmatpush2.bf16.xpose.msra.mxu0 0
    %492 = vmatprep.subr.bf16.mxu0 0
    %493 = vmatpush2.bf16.xpose.msra.mxu0 0
    %494 = vmatprep.subr.bf16.mxu0 0
    %495 = vmatpush2.bf16.xpose.msra.mxu0 0
    %496 = vmatprep.subr.bf16.mxu0 0
    %497 = vmatpush2.bf16.xpose.msra.mxu0 0
    %498 = vmatprep.subr.bf16.mxu0 0
    %499 = vmatpush2.bf16.xpose.msra.mxu0 0
    %500 = vmatprep.mubr.bf16.mxu0 0
    %501 = vmatmul.mubr.bf16.gmra.mxu0 %v463
    %v502 = vpop.f32.mrf.mxu0
    %v503 = vadd.f32 0.0, %v502
    %v504 = vpop.f32.mrf.mxu0
    %v505 = vpop.f32.mrf.mxu0
    %v506 = vpop.f32.mrf.mxu0
    %507 = vdwg.mxu0
    %v508 = vsel %vm169, %v503, -inf
    %509 = vmax.xlane.f32.xlu0 %v508
    %v510 = vpop.xlane.xlu0 %509
    %v511 = vsub.f32 %v503, %v510
    %v512 = vmul.f32 %v511, 1.442695
    %v513 = vpow.pop %v512
    %v514 = vsel %vm169, %v513, 0.0
    %515 = vadd.xlane.f32.xlu0 %v514
    %v516 = vpop.xlane.xlu0 %515
    %v517 = vrcp.pop %v516
    %v518 = vmul.f32 %v513, %v517
    %v519 = vpack.c.bf16 %v518, %v518
    %520 = vrot.lane.b32.xlu0 %v349, 48
    %v521 = vpop.permute.xlu0 %520
    %v523 = vsel %vm169, %v519, 0
    %v526 = vsel %vm187, %v521, 0
    %528 = vmatprep.subr.bf16.mxu0 0
    %529 = vmatpush1.bf16.msra.mxu0 0
    %530 = vmatprep.subr.bf16.mxu0 0
    %531 = vmatpush1.bf16.msra.mxu0 0
    %532 = vmatprep.subr.bf16.mxu0 0
    %533 = vmatpush1.bf16.msra.mxu0 0
    %534 = vmatprep.subr.bf16.mxu0 0
    %535 = vmatpush1.bf16.msra.mxu0 0
    %536 = vmatprep.subr.bf16.mxu0 0
    %537 = vmatpush1.bf16.msra.mxu0 0
    %538 = vmatprep.subr.bf16.mxu0 0
    %539 = vmatpush1.bf16.msra.mxu0 0
    %540 = vmatprep.subr.bf16.mxu0 0
    %541 = vmatpush1.bf16.msra.mxu0 0
    %542 = vmatprep.subr.bf16.mxu0 0
    %543 = vmatpush1.bf16.msra.mxu0 %v526
    %544 = vmatprep.subr.bf16.mxu0 0
    %545 = vmatpush2.bf16.msra.mxu0 0
    %546 = vmatprep.subr.bf16.mxu0 0
    %547 = vmatpush2.bf16.msra.mxu0 0
    %548 = vmatprep.subr.bf16.mxu0 0
    %549 = vmatpush2.bf16.msra.mxu0 0
    %550 = vmatprep.subr.bf16.mxu0 0
    %551 = vmatpush2.bf16.msra.mxu0 0
    %552 = vmatprep.subr.bf16.mxu0 0
    %553 = vmatpush2.bf16.msra.mxu0 0
    %554 = vmatprep.subr.bf16.mxu0 0
    %555 = vmatpush2.bf16.msra.mxu0 0
    %556 = vmatprep.subr.bf16.mxu0 0
    %557 = vmatpush2.bf16.msra.mxu0 0
    %558 = vmatprep.subr.bf16.mxu0 0
    %559 = vmatpush2.bf16.msra.mxu0 0
    %560 = vmatprep.mubr.bf16.mxu0 0
    %561 = vmatmul.mubr.bf16.gmra.mxu0 %v523
    %v562 = vpop.f32.mrf.mxu0
    %v563 = vadd.f32 0.0, %v562
    %v564 = vpop.f32.mrf.mxu0
    %v565 = vpop.f32.mrf.mxu0
    %v566 = vpop.f32.mrf.mxu0
    %567 = vdwg.mxu0
    %569 = vrot.lane.b32.xlu0 %v563, 16
    %v570 = vpop.permute.xlu0 %569
    %v572 = vsel %vm122, %v453, %v570
    %s573 = scalar_lea.vmem [#allocation7], 8
    %574 = vst.msk [vmem:[%s573] sm:$0xff] %vm70, %v572
    // Predicated region
    $region22: #{tpu_custom_call.1} parent=1 // pred_check
      _
    $region23: #{tpu_custom_call.1} parent=1 // pred_check_branch
      %576 = sbr.rel (0) target = $region25
    $region24: #{tpu_custom_call.1} parent=1 // pred_region
      %s578 = ssub.s32 256, 256
      %579 = vsyncadd [#allocation4], %s578
      %s580 = sshll.u32 [#allocation7], 4
      %s581 = int_to_ptr.vmem [resolvable:$true] %s580
      %586 = dma.vmem_to_hbm [thread:$0]  %s581, 256, %s3, [#allocation4], 128, 128, 8
    $region25: #{tpu_custom_call.1} parent=1 // pred_fallthru
      _
    // Predicated region
    $region26: #{tpu_custom_call.1} parent=1 // pred_check
      _
    $region27: #{tpu_custom_call.1} parent=1 // pred_check_branch
      %588 = sbr.rel (0) target = $region29
    $region28: #{tpu_custom_call.1} parent=1 // pred_region
      %589 = dma.done [#allocation4], 256
    $region29: #{tpu_custom_call.1} parent=1 // pred_fallthru
      _
    %590 = vsyncpa [#allocation3], 1
    %591 = vsyncpa [#allocation6], 1
    %592 = vsyncpa [#allocation4], 1

</llo_original>
